<compile_context>
chip_gen: v7x
topology: tpu7x:2x2x1
jax: 0.10.0
libtpu: 0.0.40
codegen_flags: <defaults>
</compile_context>

<pallas_src>
import math
import numpy as np
import jax
import jax.numpy as jnp
from jax.experimental import pallas as pl
from jax.experimental.pallas import tpu as pltpu  # noqa: F401  (kept for TPU-specific tuning hooks)

# ---- problem sizes (small, consistent with the module) ----
B, S, D = 2, 8, 32          # batch, seq, d_model
H = 4                        # heads
DK = D // H                  # per-head dim
DFF = 64                     # feed-forward hidden
EPS = 1e-6
NEG_INF = -1e9


def _layernorm(v, g, b):
    """Torch LayerNorm-as-written: unbiased std, eps added to std (not var)."""
    mean = jnp.mean(v, axis=-1, keepdims=True)
    var = jnp.sum((v - mean) ** 2, axis=-1, keepdims=True) / (v.shape[-1] - 1)
    std = jnp.sqrt(var)
    inv = pl.reciprocal(std + EPS, approx=False)
    return g * (v - mean) * inv + b


def encoder_layer_kernel(x_ref, mask_ref,
                         ln1_g_ref, ln1_b_ref,
                         wqkv_ref, bqkv_ref, wo_ref, bo_ref,
                         ln2_g_ref, ln2_b_ref,
                         w1_ref, b1_ref, w2_ref, b2_ref,
                         out_ref):
    x = x_ref[...]                    # (B*S, D)
    m = mask_ref[...]                 # (B, 1, S) float; 0.0 means "masked out"

    # ---------- sublayer 0: multi-head self-attention ----------
    xn = _layernorm(x, ln1_g_ref[...], ln1_b_ref[...])

    # Fused QKV projection: one (B*S, D) x (D, 3D) matmul (was 3 matmuls).
    qkv = jnp.dot(xn, wqkv_ref[...], preferred_element_type=jnp.float32) + bqkv_ref[...]
    q = qkv[:, 0 * D:1 * D]
    k = qkv[:, 1 * D:2 * D]
    v = qkv[:, 2 * D:3 * D]

    # (B*S, D) -> (H*B, S, DK): heads become a single leading batch axis so the
    # attention core is two batched dot_generals (no per-head Python loop).
    def split_heads(t):
        th = jnp.stack([t[:, h * DK:(h + 1) * DK] for h in range(H)], axis=0)  # (H, B*S, DK)
        return th.reshape(H * B, S, DK)   # pure row-major re-tiling (flat index h*B + b)

    qh, kh, vh = split_heads(q), split_heads(k), split_heads(v)

    scale = 1.0 / math.sqrt(DK)
    # scores[b', i, j] = <qh[b', i, :], kh[b', j, :]>   (no explicit transpose of K)
    scores = jax.lax.dot_general(
        qh, kh, (((2,), (2,)), ((0,), (0,))),
        preferred_element_type=jnp.float32) * scale                        # (H*B, S, S)

    # Additive mask bias computed ONCE and shared by all heads (ordering h*B + b).
    # Adding -1e9 vs masked_fill(-1e9) is numerically identical after softmax
    # (masked exp underflows to exactly 0 in f32 either way).
    mbias = jnp.where(m == 0.0, NEG_INF, 0.0)                              # (B, 1, S)
    mbias = jnp.concatenate([mbias] * H, axis=0)                           # (H*B, 1, S)
    scores = scores + mbias

    smax = jnp.max(scores, axis=-1, keepdims=True)
    p = jnp.exp(scores - smax)
    p = p * pl.reciprocal(jnp.sum(p, axis=-1, keepdims=True), approx=False)

    ctx = jax.lax.dot_general(
        p, vh, (((2,), (1,)), ((0,), (0,))),
        preferred_element_type=jnp.float32)                                # (H*B, S, DK)

    # Merge heads back onto lanes and do ONE output projection against full Wo.
    ctx = ctx.reshape(H, B * S, DK)
    ctx_cat = jnp.concatenate([ctx[h] for h in range(H)], axis=-1)         # (B*S, D)
    attn_out = jnp.dot(ctx_cat, wo_ref[...],
                       preferred_element_type=jnp.float32) + bo_ref[...]
    x1 = x + attn_out

    # ---------- sublayer 1: position-wise feed-forward ----------
    x1n = _layernorm(x1, ln2_g_ref[...], ln2_b_ref[...])
    h1 = jnp.maximum(
        jnp.dot(x1n, w1_ref[...], preferred_element_type=jnp.float32) + b1_ref[...], 0.0)
    ff = jnp.dot(h1, w2_ref[...], preferred_element_type=jnp.float32) + b2_ref[...]

    out_ref[...] = (x1 + ff).astype(out_ref.dtype)


def encoder_layer(x, mask, params):
    """x: [B,S,D] f32, mask: [B,1,S] f32 (1.0 keep / 0.0 mask)."""
    (ln1_g, ln1_b, wq, bq, wk, bk, wv, bv, wo, bo,
     ln2_g, ln2_b, w1, b1, w2, b2) = params

    # Pack QKV weights/biases host-side (tiny concat) so the kernel does one projection.
    wqkv = jnp.concatenate([wq, wk, wv], axis=1)     # (D, 3D)
    bqkv = jnp.concatenate([bq, bk, bv], axis=1)     # (1, 3D)

    # Flatten to (B*S, D): all 16 rows in one tile, single kernel invocation (no grid).
    x2d = x.reshape(B * S, D)

    out2d = pl.pallas_call(
        encoder_layer_kernel,
        out_shape=jax.ShapeDtypeStruct((B * S, D), jnp.float32),
    )(x2d, mask, ln1_g, ln1_b, wqkv, bqkv, wo, bo,
      ln2_g, ln2_b, w1, b1, w2, b2)

    return out2d.reshape(B, S, D)


# -------------------- pure-JAX reference (for sanity) --------------------
def reference(x, mask, params):
    (ln1_g, ln1_b, wq, bq, wk, bk, wv, bv, wo, bo,
     ln2_g, ln2_b, w1, b1, w2, b2) = params

    def ln(v, g, b):
        mean = v.mean(-1, keepdims=True)
        std = jnp.sqrt(((v - mean) ** 2).sum(-1, keepdims=True) / (v.shape[-1] - 1))
        return g * (v - mean) / (std + EPS) + b

    xn = ln(x, ln1_g, ln1_b)
    q = xn @ wq + bq
    k = xn @ wk + bk
    v = xn @ wv + bv

    def split(t):  # [B,S,D] -> [B,H,S,DK]
        return t.reshape(B, S, H, DK).transpose(0, 2, 1, 3)

    qh, kh, vh = split(q), split(k), split(v)
    scores = jnp.einsum("bhqd,bhkd->bhqk", qh, kh) / math.sqrt(DK)
    scores = jnp.where(mask[:, None, :, :] == 0.0, NEG_INF, scores)
    p = jax.nn.softmax(scores, axis=-1)
    ctx = jnp.einsum("bhqk,bhkd->bhqd", p, vh).transpose(0, 2, 1, 3).reshape(B, S, D)
    x1 = x + (ctx @ wo + bo)

    x1n = ln(x1, ln2_g, ln2_b)
    ff = jnp.maximum(x1n @ w1 + b1, 0.0) @ w2 + b2
    return x1 + ff


if __name__ == "__main__":
    key = jax.random.PRNGKey(0)
    ks = jax.random.split(key, 12)

    x = jax.random.normal(ks[0], (B, S, D), jnp.float32)
    # mask: keep the first few positions, mask some of the tail (deterministic)
    mask_np = np.ones((B, 1, S), np.float32)
    mask_np[0, 0, 6:] = 0.0
    mask_np[1, 0, 7:] = 0.0
    mask = jnp.asarray(mask_np)

    def w(k, shape, scale=0.1):
        return scale * jax.random.normal(k, shape, jnp.float32)

    params = (
        jnp.ones((1, D), jnp.float32),        # ln1 gamma
        jnp.zeros((1, D), jnp.float32),       # ln1 beta
        w(ks[1], (D, D)), w(ks[2], (1, D)),   # Wq, bq
        w(ks[3], (D, D)), w(ks[4], (1, D)),   # Wk, bk
        w(ks[5], (D, D)), w(ks[6], (1, D)),   # Wv, bv
        w(ks[7], (D, D)), w(ks[8], (1, D)),   # Wo, bo
        jnp.ones((1, D), jnp.float32),        # ln2 gamma
        jnp.zeros((1, D), jnp.float32),       # ln2 beta
        w(ks[9], (D, DFF)), jnp.zeros((1, DFF), jnp.float32),   # W1, b1
        w(ks[10], (DFF, D)), jnp.zeros((1, D), jnp.float32),    # W2, b2
    )

    out = encoder_layer(x, mask, params)
    out = jax.block_until_ready(out)

    ref = jax.block_until_ready(reference(x, mask, params))
    np.testing.assert_allclose(np.asarray(out), np.asarray(ref), rtol=1e-4, atol=1e-4)

    print("KERNEL_OK")
</pallas_src>

<mosaic_0001>
module attributes {stable_mosaic.version = 11 : i64} {
  func.func @encoder_layer_kernel(%arg0: memref<16x32xf32, #tpu.memory_space<vmem>>, %arg1: memref<2x1x8xf32, #tpu.memory_space<vmem>>, %arg2: memref<1x32xf32, #tpu.memory_space<vmem>>, %arg3: memref<1x32xf32, #tpu.memory_space<vmem>>, %arg4: memref<32x96xf32, #tpu.memory_space<vmem>>, %arg5: memref<1x96xf32, #tpu.memory_space<vmem>>, %arg6: memref<32x32xf32, #tpu.memory_space<vmem>>, %arg7: memref<1x32xf32, #tpu.memory_space<vmem>>, %arg8: memref<1x32xf32, #tpu.memory_space<vmem>>, %arg9: memref<1x32xf32, #tpu.memory_space<vmem>>, %arg10: memref<32x64xf32, #tpu.memory_space<vmem>>, %arg11: memref<1x64xf32, #tpu.memory_space<vmem>>, %arg12: memref<64x32xf32, #tpu.memory_space<vmem>>, %arg13: memref<1x32xf32, #tpu.memory_space<vmem>>, %arg14: memref<16x32xf32, #tpu.memory_space<vmem>>) attributes {dimension_semantics = [], scalar_prefetch = 0 : i64, scratch_operands = 0 : i64, tpu.core_type = #tpu.core_type<tc>} {
    %c0 = arith.constant 0 : index
    %c0_0 = arith.constant 0 : index
    %0 = vector.load %arg0[%c0, %c0_0] : memref<16x32xf32, #tpu.memory_space<vmem>>, vector<16x32xf32>
    %c0_1 = arith.constant 0 : index
    %c0_2 = arith.constant 0 : index
    %c0_3 = arith.constant 0 : index
    %1 = vector.load %arg1[%c0_1, %c0_2, %c0_3] : memref<2x1x8xf32, #tpu.memory_space<vmem>>, vector<2x1x8xf32>
    %c0_4 = arith.constant 0 : index
    %c0_5 = arith.constant 0 : index
    %2 = vector.load %arg2[%c0_4, %c0_5] : memref<1x32xf32, #tpu.memory_space<vmem>>, vector<1x32xf32>
    %c0_6 = arith.constant 0 : index
    %c0_7 = arith.constant 0 : index
    %3 = vector.load %arg3[%c0_6, %c0_7] : memref<1x32xf32, #tpu.memory_space<vmem>>, vector<1x32xf32>
    %cst = arith.constant dense<0.000000e+00> : vector<16xf32>
    %4 = vector.multi_reduction <add>, %0, %cst [1] : vector<16x32xf32> to vector<16xf32>
    %5 = vector.shape_cast %4 : vector<16xf32> to vector<16x1xf32>
    %cst_8 = arith.constant 3.200000e+01 : f32
    %6 = vector.broadcast %cst_8 : f32 to vector<16x1xf32>
    %7 = arith.divf %5, %6 : vector<16x1xf32>
    %8 = vector.broadcast %7 : vector<16x1xf32> to vector<16x32xf32>
    %9 = arith.subf %0, %8 : vector<16x32xf32>
    %10 = arith.mulf %9, %9 : vector<16x32xf32>
    %cst_9 = arith.constant dense<0.000000e+00> : vector<16xf32>
    %11 = vector.multi_reduction <add>, %10, %cst_9 [1] : vector<16x32xf32> to vector<16xf32>
    %12 = vector.shape_cast %11 : vector<16xf32> to vector<16x1xf32>
    %cst_10 = arith.constant 3.100000e+01 : f32
    %13 = vector.broadcast %cst_10 : f32 to vector<16x1xf32>
    %14 = arith.divf %12, %13 : vector<16x1xf32>
    %15 = math.sqrt %14 : vector<16x1xf32>
    %cst_11 = arith.constant 9.99999997E-7 : f32
    %16 = vector.broadcast %cst_11 : f32 to vector<16x1xf32>
    %17 = arith.addf %15, %16 : vector<16x1xf32>
    %18 = tpu.reciprocal %17 : vector<16x1xf32> -> vector<16x1xf32>
    %19 = vector.broadcast %7 : vector<16x1xf32> to vector<16x32xf32>
    %20 = arith.subf %0, %19 : vector<16x32xf32>
    %21 = vector.broadcast %2 : vector<1x32xf32> to vector<16x32xf32>
    %22 = arith.mulf %21, %20 : vector<16x32xf32>
    %23 = vector.broadcast %18 : vector<16x1xf32> to vector<16x32xf32>
    %24 = arith.mulf %22, %23 : vector<16x32xf32>
    %25 = vector.broadcast %3 : vector<1x32xf32> to vector<16x32xf32>
    %26 = arith.addf %24, %25 : vector<16x32xf32>
    %c0_12 = arith.constant 0 : index
    %c0_13 = arith.constant 0 : index
    %27 = vector.load %arg4[%c0_12, %c0_13] : memref<32x96xf32, #tpu.memory_space<vmem>>, vector<32x96xf32>
    %cst_14 = arith.constant dense<0.000000e+00> : vector<16x96xf32>
    %28 = tpu.matmul %26, %27, %cst_14 {dimension_numbers = #tpu.dot_dimension_numbers<[1], [0], [0], [1], [0, 0, 1, 1], [], []>} : vector<16x32xf32>, vector<32x96xf32>, vector<16x96xf32> -> vector<16x96xf32>
    %c0_15 = arith.constant 0 : index
    %c0_16 = arith.constant 0 : index
    %29 = vector.load %arg5[%c0_15, %c0_16] : memref<1x96xf32, #tpu.memory_space<vmem>>, vector<1x96xf32>
    %30 = vector.broadcast %29 : vector<1x96xf32> to vector<16x96xf32>
    %31 = arith.addf %28, %30 : vector<16x96xf32>
    %32 = vector.extract_strided_slice %31 {offsets = [0, 0], sizes = [16, 32], strides = [1, 1]} : vector<16x96xf32> to vector<16x32xf32>
    %33 = vector.extract_strided_slice %31 {offsets = [0, 32], sizes = [16, 32], strides = [1, 1]} : vector<16x96xf32> to vector<16x32xf32>
    %34 = vector.extract_strided_slice %31 {offsets = [0, 64], sizes = [16, 32], strides = [1, 1]} : vector<16x96xf32> to vector<16x32xf32>
    %35 = vector.extract_strided_slice %32 {offsets = [0, 0], sizes = [16, 8], strides = [1, 1]} : vector<16x32xf32> to vector<16x8xf32>
    %36 = vector.extract_strided_slice %32 {offsets = [0, 8], sizes = [16, 8], strides = [1, 1]} : vector<16x32xf32> to vector<16x8xf32>
    %37 = vector.extract_strided_slice %32 {offsets = [0, 16], sizes = [16, 8], strides = [1, 1]} : vector<16x32xf32> to vector<16x8xf32>
    %38 = vector.extract_strided_slice %32 {offsets = [0, 24], sizes = [16, 8], strides = [1, 1]} : vector<16x32xf32> to vector<16x8xf32>
    %39 = vector.shape_cast %35 : vector<16x8xf32> to vector<1x16x8xf32>
    %40 = vector.shape_cast %36 : vector<16x8xf32> to vector<1x16x8xf32>
    %41 = vector.shape_cast %37 : vector<16x8xf32> to vector<1x16x8xf32>
    %42 = vector.shape_cast %38 : vector<16x8xf32> to vector<1x16x8xf32>
    %43 = tpu.concatenate %39, %40, %41, %42 in 0 : vector<1x16x8xf32>, vector<1x16x8xf32>, vector<1x16x8xf32>, vector<1x16x8xf32> -> vector<4x16x8xf32>
    %44 = vector.shape_cast %43 : vector<4x16x8xf32> to vector<8x8x8xf32>
    %45 = vector.extract_strided_slice %33 {offsets = [0, 0], sizes = [16, 8], strides = [1, 1]} : vector<16x32xf32> to vector<16x8xf32>
    %46 = vector.extract_strided_slice %33 {offsets = [0, 8], sizes = [16, 8], strides = [1, 1]} : vector<16x32xf32> to vector<16x8xf32>
    %47 = vector.extract_strided_slice %33 {offsets = [0, 16], sizes = [16, 8], strides = [1, 1]} : vector<16x32xf32> to vector<16x8xf32>
    %48 = vector.extract_strided_slice %33 {offsets = [0, 24], sizes = [16, 8], strides = [1, 1]} : vector<16x32xf32> to vector<16x8xf32>
    %49 = vector.shape_cast %45 : vector<16x8xf32> to vector<1x16x8xf32>
    %50 = vector.shape_cast %46 : vector<16x8xf32> to vector<1x16x8xf32>
    %51 = vector.shape_cast %47 : vector<16x8xf32> to vector<1x16x8xf32>
    %52 = vector.shape_cast %48 : vector<16x8xf32> to vector<1x16x8xf32>
    %53 = tpu.concatenate %49, %50, %51, %52 in 0 : vector<1x16x8xf32>, vector<1x16x8xf32>, vector<1x16x8xf32>, vector<1x16x8xf32> -> vector<4x16x8xf32>
    %54 = vector.shape_cast %53 : vector<4x16x8xf32> to vector<8x8x8xf32>
    %55 = vector.extract_strided_slice %34 {offsets = [0, 0], sizes = [16, 8], strides = [1, 1]} : vector<16x32xf32> to vector<16x8xf32>
    %56 = vector.extract_strided_slice %34 {offsets = [0, 8], sizes = [16, 8], strides = [1, 1]} : vector<16x32xf32> to vector<16x8xf32>
    %57 = vector.extract_strided_slice %34 {offsets = [0, 16], sizes = [16, 8], strides = [1, 1]} : vector<16x32xf32> to vector<16x8xf32>
    %58 = vector.extract_strided_slice %34 {offsets = [0, 24], sizes = [16, 8], strides = [1, 1]} : vector<16x32xf32> to vector<16x8xf32>
    %59 = vector.shape_cast %55 : vector<16x8xf32> to vector<1x16x8xf32>
    %60 = vector.shape_cast %56 : vector<16x8xf32> to vector<1x16x8xf32>
    %61 = vector.shape_cast %57 : vector<16x8xf32> to vector<1x16x8xf32>
    %62 = vector.shape_cast %58 : vector<16x8xf32> to vector<1x16x8xf32>
    %63 = tpu.concatenate %59, %60, %61, %62 in 0 : vector<1x16x8xf32>, vector<1x16x8xf32>, vector<1x16x8xf32>, vector<1x16x8xf32> -> vector<4x16x8xf32>
    %64 = vector.shape_cast %63 : vector<4x16x8xf32> to vector<8x8x8xf32>
    %cst_17 = arith.constant dense<0.000000e+00> : vector<8x8x8xf32>
    %65 = tpu.matmul %44, %54, %cst_17 {dimension_numbers = #tpu.dot_dimension_numbers<[2], [2], [1], [1], [0, 0, 0, 1, 1, 1], [0], [0]>} : vector<8x8x8xf32>, vector<8x8x8xf32>, vector<8x8x8xf32> -> vector<8x8x8xf32>
    %cst_18 = arith.constant 0.353553385 : f32
    %66 = vector.broadcast %cst_18 : f32 to vector<8x8x8xf32>
    %67 = arith.mulf %65, %66 : vector<8x8x8xf32>
    %cst_19 = arith.constant 0.000000e+00 : f32
    %68 = vector.broadcast %cst_19 : f32 to vector<2x1x8xf32>
    %69 = arith.cmpf oeq, %1, %68 : vector<2x1x8xf32>
    %cst_20 = arith.constant -1.000000e+09 : f32
    %cst_21 = arith.constant 0.000000e+00 : f32
    %70 = vector.broadcast %cst_20 : f32 to vector<2x1x8xf32>
    %71 = vector.broadcast %cst_21 : f32 to vector<2x1x8xf32>
    %72 = arith.select %69, %70, %71 : vector<2x1x8xi1>, vector<2x1x8xf32>
    %73 = tpu.concatenate %72, %72, %72, %72 in 0 : vector<2x1x8xf32>, vector<2x1x8xf32>, vector<2x1x8xf32>, vector<2x1x8xf32> -> vector<8x1x8xf32>
    %74 = vector.broadcast %73 : vector<8x1x8xf32> to vector<8x8x8xf32>
    %75 = arith.addf %67, %74 : vector<8x8x8xf32>
    %cst_22 = arith.constant dense<0xFF800000> : vector<8x8xf32>
    %76 = vector.multi_reduction <maximumf>, %75, %cst_22 [2] : vector<8x8x8xf32> to vector<8x8xf32>
    %77 = vector.shape_cast %76 : vector<8x8xf32> to vector<8x8x1xf32>
    %78 = vector.broadcast %77 : vector<8x8x1xf32> to vector<8x8x8xf32>
    %79 = arith.subf %75, %78 : vector<8x8x8xf32>
    %80 = math.exp %79 : vector<8x8x8xf32>
    %cst_23 = arith.constant dense<0.000000e+00> : vector<8x8xf32>
    %81 = vector.multi_reduction <add>, %80, %cst_23 [2] : vector<8x8x8xf32> to vector<8x8xf32>
    %82 = vector.shape_cast %81 : vector<8x8xf32> to vector<8x8x1xf32>
    %83 = tpu.reciprocal %82 : vector<8x8x1xf32> -> vector<8x8x1xf32>
    %84 = vector.broadcast %83 : vector<8x8x1xf32> to vector<8x8x8xf32>
    %85 = arith.mulf %80, %84 : vector<8x8x8xf32>
    %cst_24 = arith.constant dense<0.000000e+00> : vector<8x8x8xf32>
    %86 = tpu.matmul %85, %64, %cst_24 {dimension_numbers = #tpu.dot_dimension_numbers<[2], [1], [1], [2], [0, 0, 0, 1, 1, 2], [0], [0]>} : vector<8x8x8xf32>, vector<8x8x8xf32>, vector<8x8x8xf32> -> vector<8x8x8xf32>
    %87 = vector.shape_cast %86 : vector<8x8x8xf32> to vector<4x16x8xf32>
    %88 = vector.extract_strided_slice %87 {offsets = [0, 0, 0], sizes = [1, 16, 8], strides = [1, 1, 1]} : vector<4x16x8xf32> to vector<1x16x8xf32>
    %89 = vector.shape_cast %88 : vector<1x16x8xf32> to vector<16x8xf32>
    %90 = vector.extract_strided_slice %87 {offsets = [1, 0, 0], sizes = [1, 16, 8], strides = [1, 1, 1]} : vector<4x16x8xf32> to vector<1x16x8xf32>
    %91 = vector.shape_cast %90 : vector<1x16x8xf32> to vector<16x8xf32>
    %92 = vector.extract_strided_slice %87 {offsets = [2, 0, 0], sizes = [1, 16, 8], strides = [1, 1, 1]} : vector<4x16x8xf32> to vector<1x16x8xf32>
    %93 = vector.shape_cast %92 : vector<1x16x8xf32> to vector<16x8xf32>
    %94 = vector.extract_strided_slice %87 {offsets = [3, 0, 0], sizes = [1, 16, 8], strides = [1, 1, 1]} : vector<4x16x8xf32> to vector<1x16x8xf32>
    %95 = vector.shape_cast %94 : vector<1x16x8xf32> to vector<16x8xf32>
    %96 = tpu.concatenate %89, %91, %93, %95 in 1 : vector<16x8xf32>, vector<16x8xf32>, vector<16x8xf32>, vector<16x8xf32> -> vector<16x32xf32>
    %c0_25 = arith.constant 0 : index
    %c0_26 = arith.constant 0 : index
    %97 = vector.load %arg6[%c0_25, %c0_26] : memref<32x32xf32, #tpu.memory_space<vmem>>, vector<32x32xf32>
    %cst_27 = arith.constant dense<0.000000e+00> : vector<16x32xf32>
    %98 = tpu.matmul %96, %97, %cst_27 {dimension_numbers = #tpu.dot_dimension_numbers<[1], [0], [0], [1], [0, 0, 1, 1], [], []>} : vector<16x32xf32>, vector<32x32xf32>, vector<16x32xf32> -> vector<16x32xf32>
    %c0_28 = arith.constant 0 : index
    %c0_29 = arith.constant 0 : index
    %99 = vector.load %arg7[%c0_28, %c0_29] : memref<1x32xf32, #tpu.memory_space<vmem>>, vector<1x32xf32>
    %100 = vector.broadcast %99 : vector<1x32xf32> to vector<16x32xf32>
    %101 = arith.addf %98, %100 : vector<16x32xf32>
    %102 = arith.addf %0, %101 : vector<16x32xf32>
    %c0_30 = arith.constant 0 : index
    %c0_31 = arith.constant 0 : index
    %103 = vector.load %arg8[%c0_30, %c0_31] : memref<1x32xf32, #tpu.memory_space<vmem>>, vector<1x32xf32>
    %c0_32 = arith.constant 0 : index
    %c0_33 = arith.constant 0 : index
    %104 = vector.load %arg9[%c0_32, %c0_33] : memref<1x32xf32, #tpu.memory_space<vmem>>, vector<1x32xf32>
    %cst_34 = arith.constant dense<0.000000e+00> : vector<16xf32>
    %105 = vector.multi_reduction <add>, %102, %cst_34 [1] : vector<16x32xf32> to vector<16xf32>
    %106 = vector.shape_cast %105 : vector<16xf32> to vector<16x1xf32>
    %cst_35 = arith.constant 3.200000e+01 : f32
    %107 = vector.broadcast %cst_35 : f32 to vector<16x1xf32>
    %108 = arith.divf %106, %107 : vector<16x1xf32>
    %109 = vector.broadcast %108 : vector<16x1xf32> to vector<16x32xf32>
    %110 = arith.subf %102, %109 : vector<16x32xf32>
    %111 = arith.mulf %110, %110 : vector<16x32xf32>
    %cst_36 = arith.constant dense<0.000000e+00> : vector<16xf32>
    %112 = vector.multi_reduction <add>, %111, %cst_36 [1] : vector<16x32xf32> to vector<16xf32>
    %113 = vector.shape_cast %112 : vector<16xf32> to vector<16x1xf32>
    %cst_37 = arith.constant 3.100000e+01 : f32
    %114 = vector.broadcast %cst_37 : f32 to vector<16x1xf32>
    %115 = arith.divf %113, %114 : vector<16x1xf32>
    %116 = math.sqrt %115 : vector<16x1xf32>
    %cst_38 = arith.constant 9.99999997E-7 : f32
    %117 = vector.broadcast %cst_38 : f32 to vector<16x1xf32>
    %118 = arith.addf %116, %117 : vector<16x1xf32>
    %119 = tpu.reciprocal %118 : vector<16x1xf32> -> vector<16x1xf32>
    %120 = vector.broadcast %108 : vector<16x1xf32> to vector<16x32xf32>
    %121 = arith.subf %102, %120 : vector<16x32xf32>
    %122 = vector.broadcast %103 : vector<1x32xf32> to vector<16x32xf32>
    %123 = arith.mulf %122, %121 : vector<16x32xf32>
    %124 = vector.broadcast %119 : vector<16x1xf32> to vector<16x32xf32>
    %125 = arith.mulf %123, %124 : vector<16x32xf32>
    %126 = vector.broadcast %104 : vector<1x32xf32> to vector<16x32xf32>
    %127 = arith.addf %125, %126 : vector<16x32xf32>
    %c0_39 = arith.constant 0 : index
    %c0_40 = arith.constant 0 : index
    %128 = vector.load %arg10[%c0_39, %c0_40] : memref<32x64xf32, #tpu.memory_space<vmem>>, vector<32x64xf32>
    %cst_41 = arith.constant dense<0.000000e+00> : vector<16x64xf32>
    %129 = tpu.matmul %127, %128, %cst_41 {dimension_numbers = #tpu.dot_dimension_numbers<[1], [0], [0], [1], [0, 0, 1, 1], [], []>} : vector<16x32xf32>, vector<32x64xf32>, vector<16x64xf32> -> vector<16x64xf32>
    %c0_42 = arith.constant 0 : index
    %c0_43 = arith.constant 0 : index
    %130 = vector.load %arg11[%c0_42, %c0_43] : memref<1x64xf32, #tpu.memory_space<vmem>>, vector<1x64xf32>
    %131 = vector.broadcast %130 : vector<1x64xf32> to vector<16x64xf32>
    %132 = arith.addf %129, %131 : vector<16x64xf32>
    %cst_44 = arith.constant 0.000000e+00 : f32
    %133 = vector.broadcast %cst_44 : f32 to vector<16x64xf32>
    %134 = arith.maximumf %132, %133 : vector<16x64xf32>
    %c0_45 = arith.constant 0 : index
    %c0_46 = arith.constant 0 : index
    %135 = vector.load %arg12[%c0_45, %c0_46] : memref<64x32xf32, #tpu.memory_space<vmem>>, vector<64x32xf32>
    %cst_47 = arith.constant dense<0.000000e+00> : vector<16x32xf32>
    %136 = tpu.matmul %134, %135, %cst_47 {dimension_numbers = #tpu.dot_dimension_numbers<[1], [0], [0], [1], [0, 0, 1, 1], [], []>} : vector<16x64xf32>, vector<64x32xf32>, vector<16x32xf32> -> vector<16x32xf32>
    %c0_48 = arith.constant 0 : index
    %c0_49 = arith.constant 0 : index
    %137 = vector.load %arg13[%c0_48, %c0_49] : memref<1x32xf32, #tpu.memory_space<vmem>>, vector<1x32xf32>
    %138 = vector.broadcast %137 : vector<1x32xf32> to vector<16x32xf32>
    %139 = arith.addf %136, %138 : vector<16x32xf32>
    %140 = arith.addf %102, %139 : vector<16x32xf32>
    %c0_50 = arith.constant 0 : index
    %c0_51 = arith.constant 0 : index
    %141 = vector.load %arg14[%c0_50, %c0_51] : memref<16x32xf32, #tpu.memory_space<vmem>>, vector<16x32xf32>
    tpu.vector_store %arg14[%c0_50, %c0_51], %140 {strides = array<i32>} : memref<16x32xf32, #tpu.memory_space<vmem>>, vector<16x32xf32>,
    return
  }
}

</mosaic_0001>

<llo_original>
// kernel: tpu_custom_call.1
$region0: #{tpu_custom_call.1}
  #allocation0 [shape = 'u32[]', space=smem, size = 0x4, offset = 0x4, fixed_abs, tag = 'smem constant byte address 0x4 - core index']
  #allocation1 [shape = 'u32[144,128]{1,0:T(1,128)}', space=vmem, size = 0x12000, scoped, tag = 'internal scratch']
  %s0 = inlined_call_operand.hbm [shape: f32[16,32], index: 0, kind: input, shape index: {}]
  %s1 = inlined_call_operand.vmem [shape: f32[2,1,8], index: 1, kind: input, shape index: {}]
  %s2 = inlined_call_operand.vmem [shape: f32[1,32], index: 2, kind: input, shape index: {}]
  %s3 = inlined_call_operand.vmem [shape: f32[1,32], index: 3, kind: input, shape index: {}]
  %s4 = inlined_call_operand.vmem [shape: f32[32,96], index: 4, kind: input, shape index: {}]
  %s5 = inlined_call_operand.vmem [shape: f32[1,96], index: 5, kind: input, shape index: {}]
  %s6 = inlined_call_operand.vmem [shape: f32[32,32], index: 6, kind: input, shape index: {}]
  %s7 = inlined_call_operand.vmem [shape: f32[1,32], index: 7, kind: input, shape index: {}]
  %s8 = inlined_call_operand.vmem [shape: f32[1,32], index: 8, kind: input, shape index: {}]
  %s9 = inlined_call_operand.vmem [shape: f32[1,32], index: 9, kind: input, shape index: {}]
  %s10 = inlined_call_operand.vmem [shape: f32[32,64], index: 10, kind: input, shape index: {}]
  %s11 = inlined_call_operand.vmem [shape: f32[1,64], index: 11, kind: input, shape index: {}]
  %s12 = inlined_call_operand.vmem [shape: f32[64,32], index: 12, kind: input, shape index: {}]
  %s13 = inlined_call_operand.vmem [shape: f32[1,32], index: 13, kind: input, shape index: {}]
  %s14 = inlined_call_operand.hbm [shape: f32[16,32], index: 14, kind: output, shape index: {}]
  %s15 = sld [smem:[#allocation0]]
  $region70: #{tpu_custom_call.1} parent=0
    _
  %s17 = ssub.s32 1, %s15
  %s18 = scalar_select 0, %s17, %s15
  $region1: #{tpu_custom_call.1} parent=0
    #allocation2 [shape = 'u8[8192]{0}', space=vmem, size = 0x2000, scoped, tag = 'input window, operand 0, single buffered']
    #allocation3 [shape = 's32[1]{0}', space=sflag, size = 0x4, scoped, tag = 'scoped memory for tpu_custom_call.1']
    #allocation4 [shape = 's32[1]{0}', space=sflag, size = 0x4, scoped, tag = 'scoped memory for tpu_custom_call.1']
    #allocation5 [shape = 'u8[8192]{0}', space=vmem, size = 0x2000, scoped, tag = 'output window, operand 0, single buffered']
    %19 = vsyncpa [#allocation3], 0
    %20 = vsyncpa [#allocation4], 0
    // Predicated region
    $region2: #{tpu_custom_call.1} parent=1 // pred_check
      _
    $region3: #{tpu_custom_call.1} parent=1 // pred_check_branch
      %22 = sbr.rel (0) target = $region5
    $region4: #{tpu_custom_call.1} parent=1 // pred_region
      %s24 = ssub.s32 256, 256
      %25 = vsyncadd [#allocation3], %s24
      %s26 = sshll.u32 [#allocation2], 4
      %s27 = int_to_ptr.vmem [resolvable:$true] %s26
      %32 = dma.hbm_to_vmem [thread:$0]  %s0, 256, %s27, [#allocation3], 128, 128, 8
    $region5: #{tpu_custom_call.1} parent=1 // pred_fallthru
      _
    // Predicated region
    $region6: #{tpu_custom_call.1} parent=1 // pred_check
      _
    $region7: #{tpu_custom_call.1} parent=1 // pred_check_branch
      %34 = sbr.rel (0) target = $region9
    $region8: #{tpu_custom_call.1} parent=1 // pred_region
      _
    $region9: #{tpu_custom_call.1} parent=1 // pred_fallthru
      _
    // Predicated region
    $region10: #{tpu_custom_call.1} parent=1 // pred_check
      _
    $region11: #{tpu_custom_call.1} parent=1 // pred_check_branch
      %36 = sbr.rel (0) target = $region13
    $region12: #{tpu_custom_call.1} parent=1 // pred_region
      _
    $region13: #{tpu_custom_call.1} parent=1 // pred_fallthru
      _
    // Predicated region
    $region14: #{tpu_custom_call.1} parent=1 // pred_check
      _
    $region15: #{tpu_custom_call.1} parent=1 // pred_check_branch
      %38 = sbr.rel (0) target = $region17
    $region16: #{tpu_custom_call.1} parent=1 // pred_region
      _
    $region17: #{tpu_custom_call.1} parent=1 // pred_fallthru
      _
    // Predicated region
    $region18: #{tpu_custom_call.1} parent=1 // pred_check
      _
    $region19: #{tpu_custom_call.1} parent=1 // pred_check_branch
      %40 = sbr.rel (0) target = $region21
    $region20: #{tpu_custom_call.1} parent=1 // pred_region
      _
    $region21: #{tpu_custom_call.1} parent=1 // pred_fallthru
      _
    // Predicated region
    $region22: #{tpu_custom_call.1} parent=1 // pred_check
      _
    $region23: #{tpu_custom_call.1} parent=1 // pred_check_branch
      %42 = sbr.rel (0) target = $region25
    $region24: #{tpu_custom_call.1} parent=1 // pred_region
      _
    $region25: #{tpu_custom_call.1} parent=1 // pred_fallthru
      _
    // Predicated region
    $region26: #{tpu_custom_call.1} parent=1 // pred_check
      _
    $region27: #{tpu_custom_call.1} parent=1 // pred_check_branch
      %44 = sbr.rel (0) target = $region29
    $region28: #{tpu_custom_call.1} parent=1 // pred_region
      _
    $region29: #{tpu_custom_call.1} parent=1 // pred_fallthru
      _
    // Predicated region
    $region30: #{tpu_custom_call.1} parent=1 // pred_check
      _
    $region31: #{tpu_custom_call.1} parent=1 // pred_check_branch
      %46 = sbr.rel (0) target = $region33
    $region32: #{tpu_custom_call.1} parent=1 // pred_region
      _
    $region33: #{tpu_custom_call.1} parent=1 // pred_fallthru
      _
    // Predicated region
    $region34: #{tpu_custom_call.1} parent=1 // pred_check
      _
    $region35: #{tpu_custom_call.1} parent=1 // pred_check_branch
      %48 = sbr.rel (0) target = $region37
    $region36: #{tpu_custom_call.1} parent=1 // pred_region
      _
    $region37: #{tpu_custom_call.1} parent=1 // pred_fallthru
      _
    // Predicated region
    $region38: #{tpu_custom_call.1} parent=1 // pred_check
      _
    $region39: #{tpu_custom_call.1} parent=1 // pred_check_branch
      %50 = sbr.rel (0) target = $region41
    $region40: #{tpu_custom_call.1} parent=1 // pred_region
      _
    $region41: #{tpu_custom_call.1} parent=1 // pred_fallthru
      _
    // Predicated region
    $region42: #{tpu_custom_call.1} parent=1 // pred_check
      _
    $region43: #{tpu_custom_call.1} parent=1 // pred_check_branch
      %52 = sbr.rel (0) target = $region45
    $region44: #{tpu_custom_call.1} parent=1 // pred_region
      _
    $region45: #{tpu_custom_call.1} parent=1 // pred_fallthru
      _
    // Predicated region
    $region46: #{tpu_custom_call.1} parent=1 // pred_check
      _
    $region47: #{tpu_custom_call.1} parent=1 // pred_check_branch
      %54 = sbr.rel (0) target = $region49
    $region48: #{tpu_custom_call.1} parent=1 // pred_region
      _
    $region49: #{tpu_custom_call.1} parent=1 // pred_fallthru
      _
    // Predicated region
    $region50: #{tpu_custom_call.1} parent=1 // pred_check
      _
    $region51: #{tpu_custom_call.1} parent=1 // pred_check_branch
      %56 = sbr.rel (0) target = $region53
    $region52: #{tpu_custom_call.1} parent=1 // pred_region
      _
    $region53: #{tpu_custom_call.1} parent=1 // pred_fallthru
      _
    // Predicated region
    $region54: #{tpu_custom_call.1} parent=1 // pred_check
      _
    $region55: #{tpu_custom_call.1} parent=1 // pred_check_branch
      %58 = sbr.rel (0) target = $region57
    $region56: #{tpu_custom_call.1} parent=1 // pred_region
      _
    $region57: #{tpu_custom_call.1} parent=1 // pred_fallthru
      _
    // Predicated region
    $region58: #{tpu_custom_call.1} parent=1 // pred_check
      _
    $region59: #{tpu_custom_call.1} parent=1 // pred_check_branch
      %60 = sbr.rel (0) target = $region61
    $region60: #{tpu_custom_call.1} parent=1 // pred_region
      %61 = dma.done [#allocation3], 256
    $region61: #{tpu_custom_call.1} parent=1 // pred_fallthru
      _
    %v62 = vld [vmem:[#allocation2] sm:$0xff]
    %v63 = vld [vmem:[#allocation2 + $0x8] sm:$0xff]
    %v64 = vld [vmem:[%s1] sm:$0x1]
    %v65 = vld [vmem:[%s1 + $0x1] sm:$0x1]
    %v66 = vld [vmem:[%s2] sm:$0x1]
    %v67 = vld [vmem:[%s3] sm:$0x1]
    %vm68 = vcmask 261120
    %v69 = vsel %vm68, %v62, 0.0
    %70 = vadd.xlane.f32.xlu0 %v69
    %v71 = vpop.xlane.xlu0 %70
    %v72 = vsel %vm68, %v63, 0.0
    %73 = vadd.xlane.f32.xlu0 %v72
    %v74 = vpop.xlane.xlu0 %73
    %v75 = vrcp.pop 32.0
    %v76 = vmul.f32 %v71, %v75
    %v77 = vmul.f32 %v74, %v75
    %v78 = vsub.f32 %v62, %v76
    %v79 = vsub.f32 %v63, %v77
    %v80 = vmul.f32 %v78, %v78
    %v81 = vmul.f32 %v79, %v79
    %v82 = vsel %vm68, %v80, 0.0
    %83 = vadd.xlane.f32.xlu0 %v82
    %v84 = vpop.xlane.xlu0 %83
    %v85 = vsel %vm68, %v81, 0.0
    %86 = vadd.xlane.f32.xlu0 %v85
    %v87 = vpop.xlane.xlu0 %86
    %v88 = vrcp.pop 31.0
    %v89 = vmul.f32 %v84, %v88
    %v90 = vmul.f32 %v87, %v88
    %v91 = vrsqrt.pop %v89
    %v92 = vmul.f32 %v89, %v91
    %vm93 = vcmp.eq.f32.partialorder %v89, inf
    %v94 = vsel %vm93, %v89, %v92
    %vm95 = vcmp.eq.f32.partialorder %v89, 0.0
    %v96 = vand.u32 %v89, 2147483648
    %v97 = vsel %vm95, %v96, %v94
    %v98 = vrsqrt.pop %v90
    %v99 = vmul.f32 %v90, %v98
    %vm100 = vcmp.eq.f32.partialorder %v90, inf
    %v101 = vsel %vm100, %v90, %v99
    %vm102 = vcmp.eq.f32.partialorder %v90, 0.0
    %v103 = vand.u32 %v90, 2147483648
    %v104 = vsel %vm102, %v103, %v101
    %v105 = vadd.f32 %v97, 1e-06
    %v106 = vadd.f32 %v104, 1e-06
    %v107 = vrcp.pop %v105
    %v108 = vrcp.pop %v106
    %v110 = vlaneseq
    %v111 = vshrl.u32 %v110, 7
    %v112 = vsub.s32 0, %v111
    %v113 = vrot.slane %v66, %v112
    %v115 = vmul.f32 %v113, %v78
    %v116 = vmul.f32 %v113, %v79
    %v117 = vmul.f32 %v115, %v107
    %v118 = vmul.f32 %v116, %v108
    %v120 = vlaneseq
    %v121 = vshrl.u32 %v120, 7
    %v122 = vsub.s32 0, %v121
    %v123 = vrot.slane %v67, %v122
    %v125 = vadd.f32 %v117, %v123
    %v126 = vadd.f32 %v118, %v123
    %v127 = vld [vmem:[%s4] sm:$0xff]
    %v128 = vld [vmem:[%s4 + $0x8] sm:$0xff]
    %v129 = vld [vmem:[%s4 + $0x10] sm:$0xff]
    %v130 = vld [vmem:[%s4 + $0x18] sm:$0xff]
    %v131 = vld [vmem:[%s5] sm:$0x1]
    %v133 = vlaneseq
    %v134 = vshrl.u32 %v133, 7
    %v135 = vsub.s32 0, %v134
    %v136 = vrot.slane %v131, %v135
    %v139 = vsel %vm68, %v125, 0
    %v142 = vsel %vm68, %v126, 0
    %144 = vmatprep.subr.mxu0 0.0
    %145 = vmatpush1.msra.mxu0 %v127
    %146 = vmatprep.subr.mxu0 0.0
    %147 = vmatpush1.msra.mxu0 %v128
    %148 = vmatprep.subr.mxu0 0.0
    %149 = vmatpush1.msra.mxu0 %v129
    %150 = vmatprep.subr.mxu0 0.0
    %151 = vmatpush1.msra.mxu0 %v130
    %152 = vmatprep.subr.mxu0 0.0
    %153 = vmatpush1.msra.mxu0 0.0
    %154 = vmatprep.subr.mxu0 0.0
    %155 = vmatpush1.msra.mxu0 0.0
    %156 = vmatprep.subr.mxu0 0.0
    %157 = vmatpush1.msra.mxu0 0.0
    %158 = vmatprep.subr.mxu0 0.0
    %159 = vmatpush1.msra.mxu0 0.0
    %160 = vmatprep.subr.mxu0 0.0
    %161 = vmatpush1.msra.mxu0 0.0
    %162 = vmatprep.subr.mxu0 0.0
    %163 = vmatpush1.msra.mxu0 0.0
    %164 = vmatprep.subr.mxu0 0.0
    %165 = vmatpush1.msra.mxu0 0.0
    %166 = vmatprep.subr.mxu0 0.0
    %167 = vmatpush1.msra.mxu0 0.0
    %168 = vmatprep.subr.mxu0 0.0
    %169 = vmatpush1.msra.mxu0 0.0
    %170 = vmatprep.subr.mxu0 0.0
    %171 = vmatpush1.msra.mxu0 0.0
    %172 = vmatprep.subr.mxu0 0.0
    %173 = vmatpush1.msra.mxu0 0.0
    %174 = vmatprep.subr.mxu0 0.0
    %175 = vmatpush1.msra.mxu0 0.0
    %176 = vmatprep.subr.mxu0 0.0
    %177 = vmatpush1.msra.mxu0 0.0
    %178 = vmatprep.subr.mxu0 0.0
    %179 = vmatpush1.msra.mxu0 0.0
    %180 = vmatprep.subr.mxu0 0.0
    %181 = vmatpush1.msra.mxu0 0.0
    %182 = vmatprep.subr.mxu0 0.0
    %183 = vmatpush1.msra.mxu0 0.0
    %184 = vmatprep.subr.mxu0 0.0
    %185 = vmatpush1.msra.mxu0 0.0
    %186 = vmatprep.subr.mxu0 0.0
    %187 = vmatpush1.msra.mxu0 0.0
    %188 = vmatprep.subr.mxu0 0.0
    %189 = vmatpush1.msra.mxu0 0.0
    %190 = vmatprep.subr.mxu0 0.0
    %191 = vmatpush1.msra.mxu0 0.0
    %192 = vmatprep.subr.mxu0 0.0
    %193 = vmatpush1.msra.mxu0 0.0
    %194 = vmatprep.subr.mxu0 0.0
    %195 = vmatpush1.msra.mxu0 0.0
    %196 = vmatprep.subr.mxu0 0.0
    %197 = vmatpush1.msra.mxu0 0.0
    %198 = vmatprep.subr.mxu0 0.0
    %199 = vmatpush1.msra.mxu0 0.0
    %200 = vmatprep.subr.mxu0 0.0
    %201 = vmatpush1.msra.mxu0 0.0
    %202 = vmatprep.subr.mxu0 0.0
    %203 = vmatpush1.msra.mxu0 0.0
    %204 = vmatprep.subr.mxu0 0.0
    %205 = vmatpush1.msra.mxu0 0.0
    %206 = vmatprep.subr.mxu0 0.0
    %207 = vmatpush1.msra.mxu0 0.0
    %208 = vmatprep.mubr.f32.mxu0 0.0
    %209 = vmatmul.mubr.f32.gmra.mrb[0].mxu0 %v139
    %v210 = vpop.f32.mrb[0].mxu0
    %v211 = vadd.f32 %v136, %v210
    %v212 = vpop.f32.mrb[0].mxu0
    %213 = vmatprep.mubr.f32.mxu0 0.0
    %214 = vmatmul.mubr.f32.gmra.mrb[0].mxu0 %v142
    %v215 = vpop.f32.mrb[0].mxu0
    %v216 = vadd.f32 %v136, %v215
    %v217 = vpop.f32.mrb[0].mxu0
    %218 = vdwg.mxu0
    %221 = vrot.lane.b32.xlu0 %v211, 120
    %v222 = vpop.permute.xlu0 %221
    %223 = vrot.lane.b32.xlu0 %v216, 120
    %v224 = vpop.permute.xlu0 %223
    %225 = vrot.lane.b32.xlu0 %v211, 112
    %v226 = vpop.permute.xlu0 %225
    %227 = vrot.lane.b32.xlu0 %v216, 112
    %v228 = vpop.permute.xlu0 %227
    %229 = vrot.lane.b32.xlu0 %v211, 104
    %v230 = vpop.permute.xlu0 %229
    %231 = vrot.lane.b32.xlu0 %v216, 104
    %v232 = vpop.permute.xlu0 %231
    %233 = vrot.lane.b32.xlu0 %v211, 96
    %v234 = vpop.permute.xlu0 %233
    %vm235 = vcmask 64512
    %v236 = vsel %vm235, %v211, 0
    %v238 = vsel %vm235, %v234, 0
    %240 = vmatprep.subr.mxu0 0.0
    %241 = vmatpush1.xpose.msra.mxu0 %v238
    %242 = vmatprep.subr.mxu0 0.0
    %243 = vmatpush1.xpose.msra.mxu0 0.0
    %244 = vmatprep.subr.mxu0 0.0
    %245 = vmatpush1.xpose.msra.mxu0 0.0
    %246 = vmatprep.subr.mxu0 0.0
    %247 = vmatpush1.xpose.msra.mxu0 0.0
    %248 = vmatprep.subr.mxu0 0.0
    %249 = vmatpush1.xpose.msra.mxu0 0.0
    %250 = vmatprep.subr.mxu0 0.0
    %251 = vmatpush1.xpose.msra.mxu0 0.0
    %252 = vmatprep.subr.mxu0 0.0
    %253 = vmatpush1.xpose.msra.mxu0 0.0
    %254 = vmatprep.subr.mxu0 0.0
    %255 = vmatpush1.xpose.msra.mxu0 0.0
    %256 = vmatprep.subr.mxu0 0.0
    %257 = vmatpush1.xpose.msra.mxu0 0.0
    %258 = vmatprep.subr.mxu0 0.0
    %259 = vmatpush1.xpose.msra.mxu0 0.0
    %260 = vmatprep.subr.mxu0 0.0
    %261 = vmatpush1.xpose.msra.mxu0 0.0
    %262 = vmatprep.subr.mxu0 0.0
    %263 = vmatpush1.xpose.msra.mxu0 0.0
    %264 = vmatprep.subr.mxu0 0.0
    %265 = vmatpush1.xpose.msra.mxu0 0.0
    %266 = vmatprep.subr.mxu0 0.0
    %267 = vmatpush1.xpose.msra.mxu0 0.0
    %268 = vmatprep.subr.mxu0 0.0
    %269 = vmatpush1.xpose.msra.mxu0 0.0
    %270 = vmatprep.subr.mxu0 0.0
    %271 = vmatpush1.xpose.msra.mxu0 0.0
    %272 = vmatprep.subr.mxu0 0.0
    %273 = vmatpush1.xpose.msra.mxu0 0.0
    %274 = vmatprep.subr.mxu0 0.0
    %275 = vmatpush1.xpose.msra.mxu0 0.0
    %276 = vmatprep.subr.mxu0 0.0
    %277 = vmatpush1.xpose.msra.mxu0 0.0
    %278 = vmatprep.subr.mxu0 0.0
    %279 = vmatpush1.xpose.msra.mxu0 0.0
    %280 = vmatprep.subr.mxu0 0.0
    %281 = vmatpush1.xpose.msra.mxu0 0.0
    %282 = vmatprep.subr.mxu0 0.0
    %283 = vmatpush1.xpose.msra.mxu0 0.0
    %284 = vmatprep.subr.mxu0 0.0
    %285 = vmatpush1.xpose.msra.mxu0 0.0
    %286 = vmatprep.subr.mxu0 0.0
    %287 = vmatpush1.xpose.msra.mxu0 0.0
    %288 = vmatprep.subr.mxu0 0.0
    %289 = vmatpush1.xpose.msra.mxu0 0.0
    %290 = vmatprep.subr.mxu0 0.0
    %291 = vmatpush1.xpose.msra.mxu0 0.0
    %292 = vmatprep.subr.mxu0 0.0
    %293 = vmatpush1.xpose.msra.mxu0 0.0
    %294 = vmatprep.subr.mxu0 0.0
    %295 = vmatpush1.xpose.msra.mxu0 0.0
    %296 = vmatprep.subr.mxu0 0.0
    %297 = vmatpush1.xpose.msra.mxu0 0.0
    %298 = vmatprep.subr.mxu0 0.0
    %299 = vmatpush1.xpose.msra.mxu0 0.0
    %300 = vmatprep.subr.mxu0 0.0
    %301 = vmatpush1.xpose.msra.mxu0 0.0
    %302 = vmatprep.subr.mxu0 0.0
    %303 = vmatpush1.xpose.msra.mxu0 0.0
    %304 = vmatprep.mubr.f32.mxu0 0.0
    %305 = vmatmul.mubr.f32.gmra.mrb[0].mxu0 %v236
    %v306 = vpop.f32.mrb[0].mxu0
    %v307 = vadd.f32 0.0, %v306
    %v308 = vpop.f32.mrb[0].mxu0
    %309 = vdwg.mxu0
    %310 = vrot.lane.b32.xlu0 %v216, 96
    %v311 = vpop.permute.xlu0 %310
    %v312 = vsel %vm235, %v216, 0
    %v314 = vsel %vm235, %v311, 0
    %316 = vmatprep.subr.mxu0 0.0
    %317 = vmatpush1.xpose.msra.mxu0 %v314
    %318 = vmatprep.subr.mxu0 0.0
    %319 = vmatpush1.xpose.msra.mxu0 0.0
    %320 = vmatprep.subr.mxu0 0.0
    %321 = vmatpush1.xpose.msra.mxu0 0.0
    %322 = vmatprep.subr.mxu0 0.0
    %323 = vmatpush1.xpose.msra.mxu0 0.0
    %324 = vmatprep.subr.mxu0 0.0
    %325 = vmatpush1.xpose.msra.mxu0 0.0
    %326 = vmatprep.subr.mxu0 0.0
    %327 = vmatpush1.xpose.msra.mxu0 0.0
    %328 = vmatprep.subr.mxu0 0.0
    %329 = vmatpush1.xpose.msra.mxu0 0.0
    %330 = vmatprep.subr.mxu0 0.0
    %331 = vmatpush1.xpose.msra.mxu0 0.0
    %332 = vmatprep.subr.mxu0 0.0
    %333 = vmatpush1.xpose.msra.mxu0 0.0
    %334 = vmatprep.subr.mxu0 0.0
    %335 = vmatpush1.xpose.msra.mxu0 0.0
    %336 = vmatprep.subr.mxu0 0.0
    %337 = vmatpush1.xpose.msra.mxu0 0.0
    %338 = vmatprep.subr.mxu0 0.0
    %339 = vmatpush1.xpose.msra.mxu0 0.0
    %340 = vmatprep.subr.mxu0 0.0
    %341 = vmatpush1.xpose.msra.mxu0 0.0
    %342 = vmatprep.subr.mxu0 0.0
    %343 = vmatpush1.xpose.msra.mxu0 0.0
    %344 = vmatprep.subr.mxu0 0.0
    %345 = vmatpush1.xpose.msra.mxu0 0.0
    %346 = vmatprep.subr.mxu0 0.0
    %347 = vmatpush1.xpose.msra.mxu0 0.0
    %348 = vmatprep.subr.mxu0 0.0
    %349 = vmatpush1.xpose.msra.mxu0 0.0
    %350 = vmatprep.subr.mxu0 0.0
    %351 = vmatpush1.xpose.msra.mxu0 0.0
    %352 = vmatprep.subr.mxu0 0.0
    %353 = vmatpush1.xpose.msra.mxu0 0.0
    %354 = vmatprep.subr.mxu0 0.0
    %355 = vmatpush1.xpose.msra.mxu0 0.0
    %356 = vmatprep.subr.mxu0 0.0
    %357 = vmatpush1.xpose.msra.mxu0 0.0
    %358 = vmatprep.subr.mxu0 0.0
    %359 = vmatpush1.xpose.msra.mxu0 0.0
    %360 = vmatprep.subr.mxu0 0.0
    %361 = vmatpush1.xpose.msra.mxu0 0.0
    %362 = vmatprep.subr.mxu0 0.0
    %363 = vmatpush1.xpose.msra.mxu0 0.0
    %364 = vmatprep.subr.mxu0 0.0
    %365 = vmatpush1.xpose.msra.mxu0 0.0
    %366 = vmatprep.subr.mxu0 0.0
    %367 = vmatpush1.xpose.msra.mxu0 0.0
    %368 = vmatprep.subr.mxu0 0.0
    %369 = vmatpush1.xpose.msra.mxu0 0.0
    %370 = vmatprep.subr.mxu0 0.0
    %371 = vmatpush1.xpose.msra.mxu0 0.0
    %372 = vmatprep.subr.mxu0 0.0
    %373 = vmatpush1.xpose.msra.mxu0 0.0
    %374 = vmatprep.subr.mxu0 0.0
    %375 = vmatpush1.xpose.msra.mxu0 0.0
    %376 = vmatprep.subr.mxu0 0.0
    %377 = vmatpush1.xpose.msra.mxu0 0.0
    %378 = vmatprep.subr.mxu0 0.0
    %379 = vmatpush1.xpose.msra.mxu0 0.0
    %380 = vmatprep.mubr.f32.mxu0 0.0
    %381 = vmatmul.mubr.f32.gmra.mrb[0].mxu0 %v312
    %v382 = vpop.f32.mrb[0].mxu0
    %v383 = vadd.f32 0.0, %v382
    %v384 = vpop.f32.mrb[0].mxu0
    %385 = vdwg.mxu0
    %386 = vrot.lane.b32.xlu0 %v222, 96
    %v387 = vpop.permute.xlu0 %386
    %v388 = vsel %vm235, %v222, 0
    %v390 = vsel %vm235, %v387, 0
    %392 = vmatprep.subr.mxu0 0.0
    %393 = vmatpush1.xpose.msra.mxu0 %v390
    %394 = vmatprep.subr.mxu0 0.0
    %395 = vmatpush1.xpose.msra.mxu0 0.0
    %396 = vmatprep.subr.mxu0 0.0
    %397 = vmatpush1.xpose.msra.mxu0 0.0
    %398 = vmatprep.subr.mxu0 0.0
    %399 = vmatpush1.xpose.msra.mxu0 0.0
    %400 = vmatprep.subr.mxu0 0.0
    %401 = vmatpush1.xpose.msra.mxu0 0.0
    %402 = vmatprep.subr.mxu0 0.0
    %403 = vmatpush1.xpose.msra.mxu0 0.0
    %404 = vmatprep.subr.mxu0 0.0
    %405 = vmatpush1.xpose.msra.mxu0 0.0
    %406 = vmatprep.subr.mxu0 0.0
    %407 = vmatpush1.xpose.msra.mxu0 0.0
    %408 = vmatprep.subr.mxu0 0.0
    %409 = vmatpush1.xpose.msra.mxu0 0.0
    %410 = vmatprep.subr.mxu0 0.0
    %411 = vmatpush1.xpose.msra.mxu0 0.0
    %412 = vmatprep.subr.mxu0 0.0
    %413 = vmatpush1.xpose.msra.mxu0 0.0
    %414 = vmatprep.subr.mxu0 0.0
    %415 = vmatpush1.xpose.msra.mxu0 0.0
    %416 = vmatprep.subr.mxu0 0.0
    %417 = vmatpush1.xpose.msra.mxu0 0.0
    %418 = vmatprep.subr.mxu0 0.0
    %419 = vmatpush1.xpose.msra.mxu0 0.0
    %420 = vmatprep.subr.mxu0 0.0
    %421 = vmatpush1.xpose.msra.mxu0 0.0
    %422 = vmatprep.subr.mxu0 0.0
    %423 = vmatpush1.xpose.msra.mxu0 0.0
    %424 = vmatprep.subr.mxu0 0.0
    %425 = vmatpush1.xpose.msra.mxu0 0.0
    %426 = vmatprep.subr.mxu0 0.0
    %427 = vmatpush1.xpose.msra.mxu0 0.0
    %428 = vmatprep.subr.mxu0 0.0
    %429 = vmatpush1.xpose.msra.mxu0 0.0
    %430 = vmatprep.subr.mxu0 0.0
    %431 = vmatpush1.xpose.msra.mxu0 0.0
    %432 = vmatprep.subr.mxu0 0.0
    %433 = vmatpush1.xpose.msra.mxu0 0.0
    %434 = vmatprep.subr.mxu0 0.0
    %435 = vmatpush1.xpose.msra.mxu0 0.0
    %436 = vmatprep.subr.mxu0 0.0
    %437 = vmatpush1.xpose.msra.mxu0 0.0
    %438 = vmatprep.subr.mxu0 0.0
    %439 = vmatpush1.xpose.msra.mxu0 0.0
    %440 = vmatprep.subr.mxu0 0.0
    %441 = vmatpush1.xpose.msra.mxu0 0.0
    %442 = vmatprep.subr.mxu0 0.0
    %443 = vmatpush1.xpose.msra.mxu0 0.0
    %444 = vmatprep.subr.mxu0 0.0
    %445 = vmatpush1.xpose.msra.mxu0 0.0
    %446 = vmatprep.subr.mxu0 0.0
    %447 = vmatpush1.xpose.msra.mxu0 0.0
    %448 = vmatprep.subr.mxu0 0.0
    %449 = vmatpush1.xpose.msra.mxu0 0.0
    %450 = vmatprep.subr.mxu0 0.0
    %451 = vmatpush1.xpose.msra.mxu0 0.0
    %452 = vmatprep.subr.mxu0 0.0
    %453 = vmatpush1.xpose.msra.mxu0 0.0
    %454 = vmatprep.subr.mxu0 0.0
    %455 = vmatpush1.xpose.msra.mxu0 0.0
    %456 = vmatprep.mubr.f32.mxu0 0.0
    %457 = vmatmul.mubr.f32.gmra.mrb[0].mxu0 %v388
    %v458 = vpop.f32.mrb[0].mxu0
    %v459 = vadd.f32 0.0, %v458
    %v460 = vpop.f32.mrb[0].mxu0
    %461 = vdwg.mxu0
    %462 = vrot.lane.b32.xlu0 %v224, 96
    %v463 = vpop.permute.xlu0 %462
    %v464 = vsel %vm235, %v224, 0
    %v466 = vsel %vm235, %v463, 0
    %468 = vmatprep.subr.mxu0 0.0
    %469 = vmatpush1.xpose.msra.mxu0 %v466
    %470 = vmatprep.subr.mxu0 0.0
    %471 = vmatpush1.xpose.msra.mxu0 0.0
    %472 = vmatprep.subr.mxu0 0.0
    %473 = vmatpush1.xpose.msra.mxu0 0.0
    %474 = vmatprep.subr.mxu0 0.0
    %475 = vmatpush1.xpose.msra.mxu0 0.0
    %476 = vmatprep.subr.mxu0 0.0
    %477 = vmatpush1.xpose.msra.mxu0 0.0
    %478 = vmatprep.subr.mxu0 0.0
    %479 = vmatpush1.xpose.msra.mxu0 0.0
    %480 = vmatprep.subr.mxu0 0.0
    %481 = vmatpush1.xpose.msra.mxu0 0.0
    %482 = vmatprep.subr.mxu0 0.0
    %483 = vmatpush1.xpose.msra.mxu0 0.0
    %484 = vmatprep.subr.mxu0 0.0
    %485 = vmatpush1.xpose.msra.mxu0 0.0
    %486 = vmatprep.subr.mxu0 0.0
    %487 = vmatpush1.xpose.msra.mxu0 0.0
    %488 = vmatprep.subr.mxu0 0.0
    %489 = vmatpush1.xpose.msra.mxu0 0.0
    %490 = vmatprep.subr.mxu0 0.0
    %491 = vmatpush1.xpose.msra.mxu0 0.0
    %492 = vmatprep.subr.mxu0 0.0
    %493 = vmatpush1.xpose.msra.mxu0 0.0
    %494 = vmatprep.subr.mxu0 0.0
    %495 = vmatpush1.xpose.msra.mxu0 0.0
    %496 = vmatprep.subr.mxu0 0.0
    %497 = vmatpush1.xpose.msra.mxu0 0.0
    %498 = vmatprep.subr.mxu0 0.0
    %499 = vmatpush1.xpose.msra.mxu0 0.0
    %500 = vmatprep.subr.mxu0 0.0
    %501 = vmatpush1.xpose.msra.mxu0 0.0
    %502 = vmatprep.subr.mxu0 0.0
    %503 = vmatpush1.xpose.msra.mxu0 0.0
    %504 = vmatprep.subr.mxu0 0.0
    %505 = vmatpush1.xpose.msra.mxu0 0.0
    %506 = vmatprep.subr.mxu0 0.0
    %507 = vmatpush1.xpose.msra.mxu0 0.0
    %508 = vmatprep.subr.mxu0 0.0
    %509 = vmatpush1.xpose.msra.mxu0 0.0
    %510 = vmatprep.subr.mxu0 0.0
    %511 = vmatpush1.xpose.msra.mxu0 0.0
    %512 = vmatprep.subr.mxu0 0.0
    %513 = vmatpush1.xpose.msra.mxu0 0.0
    %514 = vmatprep.subr.mxu0 0.0
    %515 = vmatpush1.xpose.msra.mxu0 0.0
    %516 = vmatprep.subr.mxu0 0.0
    %517 = vmatpush1.xpose.msra.mxu0 0.0
    %518 = vmatprep.subr.mxu0 0.0
    %519 = vmatpush1.xpose.msra.mxu0 0.0
    %520 = vmatprep.subr.mxu0 0.0
    %521 = vmatpush1.xpose.msra.mxu0 0.0
    %522 = vmatprep.subr.mxu0 0.0
    %523 = vmatpush1.xpose.msra.mxu0 0.0
    %524 = vmatprep.subr.mxu0 0.0
    %525 = vmatpush1.xpose.msra.mxu0 0.0
    %526 = vmatprep.subr.mxu0 0.0
    %527 = vmatpush1.xpose.msra.mxu0 0.0
    %528 = vmatprep.subr.mxu0 0.0
    %529 = vmatpush1.xpose.msra.mxu0 0.0
    %530 = vmatprep.subr.mxu0 0.0
    %531 = vmatpush1.xpose.msra.mxu0 0.0
    %532 = vmatprep.mubr.f32.mxu0 0.0
    %533 = vmatmul.mubr.f32.gmra.mrb[0].mxu0 %v464
    %v534 = vpop.f32.mrb[0].mxu0
    %v535 = vadd.f32 0.0, %v534
    %v536 = vpop.f32.mrb[0].mxu0
    %537 = vdwg.mxu0
    %538 = vrot.lane.b32.xlu0 %v226, 96
    %v539 = vpop.permute.xlu0 %538
    %v540 = vsel %vm235, %v226, 0
    %v542 = vsel %vm235, %v539, 0
    %544 = vmatprep.subr.mxu0 0.0
    %545 = vmatpush1.xpose.msra.mxu0 %v542
    %546 = vmatprep.subr.mxu0 0.0
    %547 = vmatpush1.xpose.msra.mxu0 0.0
    %548 = vmatprep.subr.mxu0 0.0
    %549 = vmatpush1.xpose.msra.mxu0 0.0
    %550 = vmatprep.subr.mxu0 0.0
    %551 = vmatpush1.xpose.msra.mxu0 0.0
    %552 = vmatprep.subr.mxu0 0.0
    %553 = vmatpush1.xpose.msra.mxu0 0.0
    %554 = vmatprep.subr.mxu0 0.0
    %555 = vmatpush1.xpose.msra.mxu0 0.0
    %556 = vmatprep.subr.mxu0 0.0
    %557 = vmatpush1.xpose.msra.mxu0 0.0
    %558 = vmatprep.subr.mxu0 0.0
    %559 = vmatpush1.xpose.msra.mxu0 0.0
    %560 = vmatprep.subr.mxu0 0.0
    %561 = vmatpush1.xpose.msra.mxu0 0.0
    %562 = vmatprep.subr.mxu0 0.0
    %563 = vmatpush1.xpose.msra.mxu0 0.0
    %564 = vmatprep.subr.mxu0 0.0
    %565 = vmatpush1.xpose.msra.mxu0 0.0
    %566 = vmatprep.subr.mxu0 0.0
    %567 = vmatpush1.xpose.msra.mxu0 0.0
    %568 = vmatprep.subr.mxu0 0.0
    %569 = vmatpush1.xpose.msra.mxu0 0.0
    %570 = vmatprep.subr.mxu0 0.0
    %571 = vmatpush1.xpose.msra.mxu0 0.0
    %572 = vmatprep.subr.mxu0 0.0
    %573 = vmatpush1.xpose.msra.mxu0 0.0
    %574 = vmatprep.subr.mxu0 0.0
    %575 = vmatpush1.xpose.msra.mxu0 0.0
    %576 = vmatprep.subr.mxu0 0.0
    %577 = vmatpush1.xpose.msra.mxu0 0.0
    %578 = vmatprep.subr.mxu0 0.0
    %579 = vmatpush1.xpose.msra.mxu0 0.0
    %580 = vmatprep.subr.mxu0 0.0
    %581 = vmatpush1.xpose.msra.mxu0 0.0
    %582 = vmatprep.subr.mxu0 0.0
    %583 = vmatpush1.xpose.msra.mxu0 0.0
    %584 = vmatprep.subr.mxu0 0.0
    %585 = vmatpush1.xpose.msra.mxu0 0.0
    %586 = vmatprep.subr.mxu0 0.0
    %587 = vmatpush1.xpose.msra.mxu0 0.0
    %588 = vmatprep.subr.mxu0 0.0
    %589 = vmatpush1.xpose.msra.mxu0 0.0
    %590 = vmatprep.subr.mxu0 0.0
    %591 = vmatpush1.xpose.msra.mxu0 0.0
    %592 = vmatprep.subr.mxu0 0.0
    %593 = vmatpush1.xpose.msra.mxu0 0.0
    %594 = vmatprep.subr.mxu0 0.0
    %595 = vmatpush1.xpose.msra.mxu0 0.0
    %596 = vmatprep.subr.mxu0 0.0
    %597 = vmatpush1.xpose.msra.mxu0 0.0
    %598 = vmatprep.subr.mxu0 0.0
    %599 = vmatpush1.xpose.msra.mxu0 0.0
    %600 = vmatprep.subr.mxu0 0.0
    %601 = vmatpush1.xpose.msra.mxu0 0.0
    %602 = vmatprep.subr.mxu0 0.0
    %603 = vmatpush1.xpose.msra.mxu0 0.0
    %604 = vmatprep.subr.mxu0 0.0
    %605 = vmatpush1.xpose.msra.mxu0 0.0
    %606 = vmatprep.subr.mxu0 0.0
    %607 = vmatpush1.xpose.msra.mxu0 0.0
    %608 = vmatprep.mubr.f32.mxu0 0.0
    %609 = vmatmul.mubr.f32.gmra.mrb[0].mxu0 %v540
    %v610 = vpop.f32.mrb[0].mxu0
    %v611 = vadd.f32 0.0, %v610
    %v612 = vpop.f32.mrb[0].mxu0
    %613 = vdwg.mxu0
    %614 = vrot.lane.b32.xlu0 %v228, 96
    %v615 = vpop.permute.xlu0 %614
    %v616 = vsel %vm235, %v228, 0
    %v618 = vsel %vm235, %v615, 0
    %620 = vmatprep.subr.mxu0 0.0
    %621 = vmatpush1.xpose.msra.mxu0 %v618
    %622 = vmatprep.subr.mxu0 0.0
    %623 = vmatpush1.xpose.msra.mxu0 0.0
    %624 = vmatprep.subr.mxu0 0.0
    %625 = vmatpush1.xpose.msra.mxu0 0.0
    %626 = vmatprep.subr.mxu0 0.0
    %627 = vmatpush1.xpose.msra.mxu0 0.0
    %628 = vmatprep.subr.mxu0 0.0
    %629 = vmatpush1.xpose.msra.mxu0 0.0
    %630 = vmatprep.subr.mxu0 0.0
    %631 = vmatpush1.xpose.msra.mxu0 0.0
    %632 = vmatprep.subr.mxu0 0.0
    %633 = vmatpush1.xpose.msra.mxu0 0.0
    %634 = vmatprep.subr.mxu0 0.0
    %635 = vmatpush1.xpose.msra.mxu0 0.0
    %636 = vmatprep.subr.mxu0 0.0
    %637 = vmatpush1.xpose.msra.mxu0 0.0
    %638 = vmatprep.subr.mxu0 0.0
    %639 = vmatpush1.xpose.msra.mxu0 0.0
    %640 = vmatprep.subr.mxu0 0.0
    %641 = vmatpush1.xpose.msra.mxu0 0.0
    %642 = vmatprep.subr.mxu0 0.0
    %643 = vmatpush1.xpose.msra.mxu0 0.0
    %644 = vmatprep.subr.mxu0 0.0
    %645 = vmatpush1.xpose.msra.mxu0 0.0
    %646 = vmatprep.subr.mxu0 0.0
    %647 = vmatpush1.xpose.msra.mxu0 0.0
    %648 = vmatprep.subr.mxu0 0.0
    %649 = vmatpush1.xpose.msra.mxu0 0.0
    %650 = vmatprep.subr.mxu0 0.0
    %651 = vmatpush1.xpose.msra.mxu0 0.0
    %652 = vmatprep.subr.mxu0 0.0
    %653 = vmatpush1.xpose.msra.mxu0 0.0
    %654 = vmatprep.subr.mxu0 0.0
    %655 = vmatpush1.xpose.msra.mxu0 0.0
    %656 = vmatprep.subr.mxu0 0.0
    %657 = vmatpush1.xpose.msra.mxu0 0.0
    %658 = vmatprep.subr.mxu0 0.0
    %659 = vmatpush1.xpose.msra.mxu0 0.0
    %660 = vmatprep.subr.mxu0 0.0
    %661 = vmatpush1.xpose.msra.mxu0 0.0
    %662 = vmatprep.subr.mxu0 0.0
    %663 = vmatpush1.xpose.msra.mxu0 0.0
    %664 = vmatprep.subr.mxu0 0.0
    %665 = vmatpush1.xpose.msra.mxu0 0.0
    %666 = vmatprep.subr.mxu0 0.0
    %667 = vmatpush1.xpose.msra.mxu0 0.0
    %668 = vmatprep.subr.mxu0 0.0
    %669 = vmatpush1.xpose.msra.mxu0 0.0
    %670 = vmatprep.subr.mxu0 0.0
    %671 = vmatpush1.xpose.msra.mxu0 0.0
    %672 = vmatprep.subr.mxu0 0.0
    %673 = vmatpush1.xpose.msra.mxu0 0.0
    %674 = vmatprep.subr.mxu0 0.0
    %675 = vmatpush1.xpose.msra.mxu0 0.0
    %676 = vmatprep.subr.mxu0 0.0
    %677 = vmatpush1.xpose.msra.mxu0 0.0
    %678 = vmatprep.subr.mxu0 0.0
    %679 = vmatpush1.xpose.msra.mxu0 0.0
    %680 = vmatprep.subr.mxu0 0.0
    %681 = vmatpush1.xpose.msra.mxu0 0.0
    %682 = vmatprep.subr.mxu0 0.0
    %683 = vmatpush1.xpose.msra.mxu0 0.0
    %684 = vmatprep.mubr.f32.mxu0 0.0
    %685 = vmatmul.mubr.f32.gmra.mrb[0].mxu0 %v616
    %v686 = vpop.f32.mrb[0].mxu0
    %v687 = vadd.f32 0.0, %v686
    %v688 = vpop.f32.mrb[0].mxu0
    %689 = vdwg.mxu0
    %690 = vrot.lane.b32.xlu0 %v230, 96
    %v691 = vpop.permute.xlu0 %690
    %v692 = vsel %vm235, %v230, 0
    %v694 = vsel %vm235, %v691, 0
    %696 = vmatprep.subr.mxu0 0.0
    %697 = vmatpush1.xpose.msra.mxu0 %v694
    %698 = vmatprep.subr.mxu0 0.0
    %699 = vmatpush1.xpose.msra.mxu0 0.0
    %700 = vmatprep.subr.mxu0 0.0
    %701 = vmatpush1.xpose.msra.mxu0 0.0
    %702 = vmatprep.subr.mxu0 0.0
    %703 = vmatpush1.xpose.msra.mxu0 0.0
    %704 = vmatprep.subr.mxu0 0.0
    %705 = vmatpush1.xpose.msra.mxu0 0.0
    %706 = vmatprep.subr.mxu0 0.0
    %707 = vmatpush1.xpose.msra.mxu0 0.0
    %708 = vmatprep.subr.mxu0 0.0
    %709 = vmatpush1.xpose.msra.mxu0 0.0
    %710 = vmatprep.subr.mxu0 0.0
    %711 = vmatpush1.xpose.msra.mxu0 0.0
    %712 = vmatprep.subr.mxu0 0.0
    %713 = vmatpush1.xpose.msra.mxu0 0.0
    %714 = vmatprep.subr.mxu0 0.0
    %715 = vmatpush1.xpose.msra.mxu0 0.0
    %716 = vmatprep.subr.mxu0 0.0
    %717 = vmatpush1.xpose.msra.mxu0 0.0
    %718 = vmatprep.subr.mxu0 0.0
    %719 = vmatpush1.xpose.msra.mxu0 0.0
    %720 = vmatprep.subr.mxu0 0.0
    %721 = vmatpush1.xpose.msra.mxu0 0.0
    %722 = vmatprep.subr.mxu0 0.0
    %723 = vmatpush1.xpose.msra.mxu0 0.0
    %724 = vmatprep.subr.mxu0 0.0
    %725 = vmatpush1.xpose.msra.mxu0 0.0
    %726 = vmatprep.subr.mxu0 0.0
    %727 = vmatpush1.xpose.msra.mxu0 0.0
    %728 = vmatprep.subr.mxu0 0.0
    %729 = vmatpush1.xpose.msra.mxu0 0.0
    %730 = vmatprep.subr.mxu0 0.0
    %731 = vmatpush1.xpose.msra.mxu0 0.0
    %732 = vmatprep.subr.mxu0 0.0
    %733 = vmatpush1.xpose.msra.mxu0 0.0
    %734 = vmatprep.subr.mxu0 0.0
    %735 = vmatpush1.xpose.msra.mxu0 0.0
    %736 = vmatprep.subr.mxu0 0.0
    %737 = vmatpush1.xpose.msra.mxu0 0.0
    %738 = vmatprep.subr.mxu0 0.0
    %739 = vmatpush1.xpose.msra.mxu0 0.0
    %740 = vmatprep.subr.mxu0 0.0
    %741 = vmatpush1.xpose.msra.mxu0 0.0
    %742 = vmatprep.subr.mxu0 0.0
    %743 = vmatpush1.xpose.msra.mxu0 0.0
    %744 = vmatprep.subr.mxu0 0.0
    %745 = vmatpush1.xpose.msra.mxu0 0.0
    %746 = vmatprep.subr.mxu0 0.0
    %747 = vmatpush1.xpose.msra.mxu0 0.0
    %748 = vmatprep.subr.mxu0 0.0
    %749 = vmatpush1.xpose.msra.mxu0 0.0
    %750 = vmatprep.subr.mxu0 0.0
    %751 = vmatpush1.xpose.msra.mxu0 0.0
    %752 = vmatprep.subr.mxu0 0.0
    %753 = vmatpush1.xpose.msra.mxu0 0.0
    %754 = vmatprep.subr.mxu0 0.0
    %755 = vmatpush1.xpose.msra.mxu0 0.0
    %756 = vmatprep.subr.mxu0 0.0
    %757 = vmatpush1.xpose.msra.mxu0 0.0
    %758 = vmatprep.subr.mxu0 0.0
    %759 = vmatpush1.xpose.msra.mxu0 0.0
    %760 = vmatprep.mubr.f32.mxu0 0.0
    %761 = vmatmul.mubr.f32.gmra.mrb[0].mxu0 %v692
    %v762 = vpop.f32.mrb[0].mxu0
    %v763 = vadd.f32 0.0, %v762
    %v764 = vpop.f32.mrb[0].mxu0
    %765 = vdwg.mxu0
    %766 = vrot.lane.b32.xlu0 %v232, 96
    %v767 = vpop.permute.xlu0 %766
    %v768 = vsel %vm235, %v232, 0
    %v770 = vsel %vm235, %v767, 0
    %772 = vmatprep.subr.mxu0 0.0
    %773 = vmatpush1.xpose.msra.mxu0 %v770
    %774 = vmatprep.subr.mxu0 0.0
    %775 = vmatpush1.xpose.msra.mxu0 0.0
    %776 = vmatprep.subr.mxu0 0.0
    %777 = vmatpush1.xpose.msra.mxu0 0.0
    %778 = vmatprep.subr.mxu0 0.0
    %779 = vmatpush1.xpose.msra.mxu0 0.0
    %780 = vmatprep.subr.mxu0 0.0
    %781 = vmatpush1.xpose.msra.mxu0 0.0
    %782 = vmatprep.subr.mxu0 0.0
    %783 = vmatpush1.xpose.msra.mxu0 0.0
    %784 = vmatprep.subr.mxu0 0.0
    %785 = vmatpush1.xpose.msra.mxu0 0.0
    %786 = vmatprep.subr.mxu0 0.0
    %787 = vmatpush1.xpose.msra.mxu0 0.0
    %788 = vmatprep.subr.mxu0 0.0
    %789 = vmatpush1.xpose.msra.mxu0 0.0
    %790 = vmatprep.subr.mxu0 0.0
    %791 = vmatpush1.xpose.msra.mxu0 0.0
    %792 = vmatprep.subr.mxu0 0.0
    %793 = vmatpush1.xpose.msra.mxu0 0.0
    %794 = vmatprep.subr.mxu0 0.0
    %795 = vmatpush1.xpose.msra.mxu0 0.0
    %796 = vmatprep.subr.mxu0 0.0
    %797 = vmatpush1.xpose.msra.mxu0 0.0
    %798 = vmatprep.subr.mxu0 0.0
    %799 = vmatpush1.xpose.msra.mxu0 0.0
    %800 = vmatprep.subr.mxu0 0.0
    %801 = vmatpush1.xpose.msra.mxu0 0.0
    %802 = vmatprep.subr.mxu0 0.0
    %803 = vmatpush1.xpose.msra.mxu0 0.0
    %804 = vmatprep.subr.mxu0 0.0
    %805 = vmatpush1.xpose.msra.mxu0 0.0
    %806 = vmatprep.subr.mxu0 0.0
    %807 = vmatpush1.xpose.msra.mxu0 0.0
    %808 = vmatprep.subr.mxu0 0.0
    %809 = vmatpush1.xpose.msra.mxu0 0.0
    %810 = vmatprep.subr.mxu0 0.0
    %811 = vmatpush1.xpose.msra.mxu0 0.0
    %812 = vmatprep.subr.mxu0 0.0
    %813 = vmatpush1.xpose.msra.mxu0 0.0
    %814 = vmatprep.subr.mxu0 0.0
    %815 = vmatpush1.xpose.msra.mxu0 0.0
    %816 = vmatprep.subr.mxu0 0.0
    %817 = vmatpush1.xpose.msra.mxu0 0.0
    %818 = vmatprep.subr.mxu0 0.0
    %819 = vmatpush1.xpose.msra.mxu0 0.0
    %820 = vmatprep.subr.mxu0 0.0
    %821 = vmatpush1.xpose.msra.mxu0 0.0
    %822 = vmatprep.subr.mxu0 0.0
    %823 = vmatpush1.xpose.msra.mxu0 0.0
    %824 = vmatprep.subr.mxu0 0.0
    %825 = vmatpush1.xpose.msra.mxu0 0.0
    %826 = vmatprep.subr.mxu0 0.0
    %827 = vmatpush1.xpose.msra.mxu0 0.0
    %828 = vmatprep.subr.mxu0 0.0
    %829 = vmatpush1.xpose.msra.mxu0 0.0
    %830 = vmatprep.subr.mxu0 0.0
    %831 = vmatpush1.xpose.msra.mxu0 0.0
    %832 = vmatprep.subr.mxu0 0.0
    %833 = vmatpush1.xpose.msra.mxu0 0.0
    %834 = vmatprep.subr.mxu0 0.0
    %835 = vmatpush1.xpose.msra.mxu0 0.0
    %836 = vmatprep.mubr.f32.mxu0 0.0
    %837 = vmatmul.mubr.f32.gmra.mrb[0].mxu0 %v768
    %v838 = vpop.f32.mrb[0].mxu0
    %v839 = vadd.f32 0.0, %v838
    %v840 = vpop.f32.mrb[0].mxu0
    %841 = vdwg.mxu0
    %v842 = vmul.f32 %v307, 0.35355338
    %v843 = vmul.f32 %v383, 0.35355338
    %v844 = vmul.f32 %v459, 0.35355338
    %v845 = vmul.f32 %v535, 0.35355338
    %v846 = vmul.f32 %v611, 0.35355338
    %v847 = vmul.f32 %v687, 0.35355338
    %v848 = vmul.f32 %v763, 0.35355338
    %v849 = vmul.f32 %v839, 0.35355338
    %vm850 = vcmp.eq.f32.partialorder %v64, 0.0
    %vm851 = vcmp.eq.f32.partialorder %v65, 0.0
    %v852 = vsel %vm850, -1e+09, 0.0
    %v853 = vsel %vm851, -1e+09, 0.0
    %v856 = vlaneseq
    %v857 = vshrl.u32 %v856, 7
    %v858 = vsub.s32 0, %v857
    %v859 = vrot.slane %v852, %v858
    %v860 = vlaneseq
    %v861 = vshrl.u32 %v860, 7
    %v862 = vsub.s32 0, %v861
    %v863 = vrot.slane %v853, %v862
    %v866 = vadd.f32 %v842, %v859
    %v867 = vadd.f32 %v843, %v863
    %v868 = vadd.f32 %v844, %v859
    %v869 = vadd.f32 %v845, %v863
    %v870 = vadd.f32 %v846, %v859
    %v871 = vadd.f32 %v847, %v863
    %v872 = vadd.f32 %v848, %v859
    %v873 = vadd.f32 %v849, %v863
    %v874 = vsel %vm235, %v866, -inf
    %875 = vmax.xlane.f32.xlu0 %v874
    %v876 = vpop.xlane.xlu0 %875
    %v877 = vsel %vm235, %v867, -inf
    %878 = vmax.xlane.f32.xlu0 %v877
    %v879 = vpop.xlane.xlu0 %878
    %v880 = vsel %vm235, %v868, -inf
    %881 = vmax.xlane.f32.xlu0 %v880
    %v882 = vpop.xlane.xlu0 %881
    %v883 = vsel %vm235, %v869, -inf
    %884 = vmax.xlane.f32.xlu0 %v883
    %v885 = vpop.xlane.xlu0 %884
    %v886 = vsel %vm235, %v870, -inf
    %887 = vmax.xlane.f32.xlu0 %v886
    %v888 = vpop.xlane.xlu0 %887
    %v889 = vsel %vm235, %v871, -inf
    %890 = vmax.xlane.f32.xlu0 %v889
    %v891 = vpop.xlane.xlu0 %890
    %v892 = vsel %vm235, %v872, -inf
    %893 = vmax.xlane.f32.xlu0 %v892
    %v894 = vpop.xlane.xlu0 %893
    %v895 = vsel %vm235, %v873, -inf
    %896 = vmax.xlane.f32.xlu0 %v895
    %v897 = vpop.xlane.xlu0 %896
    %v898 = vsub.f32 %v866, %v876
    %v899 = vsub.f32 %v867, %v879
    %v900 = vsub.f32 %v868, %v882
    %v901 = vsub.f32 %v869, %v885
    %v902 = vsub.f32 %v870, %v888
    %v903 = vsub.f32 %v871, %v891
    %v904 = vsub.f32 %v872, %v894
    %v905 = vsub.f32 %v873, %v897
    %v906 = vmul.f32 %v898, 1.442695
    %v907 = vpow.pop %v906
    %v908 = vmul.f32 %v899, 1.442695
    %v909 = vpow.pop %v908
    %v910 = vmul.f32 %v900, 1.442695
    %v911 = vpow.pop %v910
    %v912 = vmul.f32 %v901, 1.442695
    %v913 = vpow.pop %v912
    %v914 = vmul.f32 %v902, 1.442695
    %v915 = vpow.pop %v914
    %v916 = vmul.f32 %v903, 1.442695
    %v917 = vpow.pop %v916
    %v918 = vmul.f32 %v904, 1.442695
    %v919 = vpow.pop %v918
    %v920 = vmul.f32 %v905, 1.442695
    %v921 = vpow.pop %v920
    %v922 = vsel %vm235, %v907, 0.0
    %923 = vadd.xlane.f32.xlu0 %v922
    %v924 = vpop.xlane.xlu0 %923
    %v925 = vsel %vm235, %v909, 0.0
    %926 = vadd.xlane.f32.xlu0 %v925
    %v927 = vpop.xlane.xlu0 %926
    %v928 = vsel %vm235, %v911, 0.0
    %929 = vadd.xlane.f32.xlu0 %v928
    %v930 = vpop.xlane.xlu0 %929
    %v931 = vsel %vm235, %v913, 0.0
    %932 = vadd.xlane.f32.xlu0 %v931
    %v933 = vpop.xlane.xlu0 %932
    %v934 = vsel %vm235, %v915, 0.0
    %935 = vadd.xlane.f32.xlu0 %v934
    %v936 = vpop.xlane.xlu0 %935
    %v937 = vsel %vm235, %v917, 0.0
    %938 = vadd.xlane.f32.xlu0 %v937
    %v939 = vpop.xlane.xlu0 %938
    %v940 = vsel %vm235, %v919, 0.0
    %941 = vadd.xlane.f32.xlu0 %v940
    %v942 = vpop.xlane.xlu0 %941
    %v943 = vsel %vm235, %v921, 0.0
    %944 = vadd.xlane.f32.xlu0 %v943
    %v945 = vpop.xlane.xlu0 %944
    %v946 = vrcp.pop %v924
    %v947 = vrcp.pop %v927
    %v948 = vrcp.pop %v930
    %v949 = vrcp.pop %v933
    %v950 = vrcp.pop %v936
    %v951 = vrcp.pop %v939
    %v952 = vrcp.pop %v942
    %v953 = vrcp.pop %v945
    %v954 = vmul.f32 %v907, %v946
    %v955 = vmul.f32 %v909, %v947
    %v956 = vmul.f32 %v911, %v948
    %v957 = vmul.f32 %v913, %v949
    %v958 = vmul.f32 %v915, %v950
    %v959 = vmul.f32 %v917, %v951
    %v960 = vmul.f32 %v919, %v952
    %v961 = vmul.f32 %v921, %v953
    %962 = vrot.lane.b32.xlu0 %v211, 64
    %v963 = vpop.permute.xlu0 %962
    %v966 = vsel %vm235, %v954, 0
    %968 = vmatprep.subr.mxu0 0.0
    %969 = vmatpush1.msra.mxu0 %v963
    %970 = vmatprep.subr.mxu0 0.0
    %971 = vmatpush1.msra.mxu0 0.0
    %972 = vmatprep.subr.mxu0 0.0
    %973 = vmatpush1.msra.mxu0 0.0
    %974 = vmatprep.subr.mxu0 0.0
    %975 = vmatpush1.msra.mxu0 0.0
    %976 = vmatprep.subr.mxu0 0.0
    %977 = vmatpush1.msra.mxu0 0.0
    %978 = vmatprep.subr.mxu0 0.0
    %979 = vmatpush1.msra.mxu0 0.0
    %980 = vmatprep.subr.mxu0 0.0
    %981 = vmatpush1.msra.mxu0 0.0
    %982 = vmatprep.subr.mxu0 0.0
    %983 = vmatpush1.msra.mxu0 0.0
    %984 = vmatprep.subr.mxu0 0.0
    %985 = vmatpush1.msra.mxu0 0.0
    %986 = vmatprep.subr.mxu0 0.0
    %987 = vmatpush1.msra.mxu0 0.0
    %988 = vmatprep.subr.mxu0 0.0
    %989 = vmatpush1.msra.mxu0 0.0
    %990 = vmatprep.subr.mxu0 0.0
    %991 = vmatpush1.msra.mxu0 0.0
    %992 = vmatprep.subr.mxu0 0.0
    %993 = vmatpush1.msra.mxu0 0.0
    %994 = vmatprep.subr.mxu0 0.0
    %995 = vmatpush1.msra.mxu0 0.0
    %996 = vmatprep.subr.mxu0 0.0
    %997 = vmatpush1.msra.mxu0 0.0
    %998 = vmatprep.subr.mxu0 0.0
    %999 = vmatpush1.msra.mxu0 0.0
    %1000 = vmatprep.subr.mxu0 0.0
    %1001 = vmatpush1.msra.mxu0 0.0
    %1002 = vmatprep.subr.mxu0 0.0
    %1003 = vmatpush1.msra.mxu0 0.0
    %1004 = vmatprep.subr.mxu0 0.0
    %1005 = vmatpush1.msra.mxu0 0.0
    %1006 = vmatprep.subr.mxu0 0.0
    %1007 = vmatpush1.msra.mxu0 0.0
    %1008 = vmatprep.subr.mxu0 0.0
    %1009 = vmatpush1.msra.mxu0 0.0
    %1010 = vmatprep.subr.mxu0 0.0
    %1011 = vmatpush1.msra.mxu0 0.0
    %1012 = vmatprep.subr.mxu0 0.0
    %1013 = vmatpush1.msra.mxu0 0.0
    %1014 = vmatprep.subr.mxu0 0.0
    %1015 = vmatpush1.msra.mxu0 0.0
    %1016 = vmatprep.subr.mxu0 0.0
    %1017 = vmatpush1.msra.mxu0 0.0
    %1018 = vmatprep.subr.mxu0 0.0
    %1019 = vmatpush1.msra.mxu0 0.0
    %1020 = vmatprep.subr.mxu0 0.0
    %1021 = vmatpush1.msra.mxu0 0.0
    %1022 = vmatprep.subr.mxu0 0.0
    %1023 = vmatpush1.msra.mxu0 0.0
    %1024 = vmatprep.subr.mxu0 0.0
    %1025 = vmatpush1.msra.mxu0 0.0
    %1026 = vmatprep.subr.mxu0 0.0
    %1027 = vmatpush1.msra.mxu0 0.0
    %1028 = vmatprep.subr.mxu0 0.0
    %1029 = vmatpush1.msra.mxu0 0.0
    %1030 = vmatprep.subr.mxu0 0.0
    %1031 = vmatpush1.msra.mxu0 0.0
    %1032 = vmatprep.mubr.f32.mxu0 0.0
    %1033 = vmatmul.mubr.f32.gmra.mrb[0].mxu0 %v966
    %v1034 = vpop.f32.mrb[0].mxu0
    %v1035 = vadd.f32 0.0, %v1034
    %v1036 = vpop.f32.mrb[0].mxu0
    %1037 = vdwg.mxu0
    %1038 = vrot.lane.b32.xlu0 %v216, 64
    %v1039 = vpop.permute.xlu0 %1038
    %v1042 = vsel %vm235, %v955, 0
    %1044 = vmatprep.subr.mxu0 0.0
    %1045 = vmatpush1.msra.mxu0 %v1039
    %1046 = vmatprep.subr.mxu0 0.0
    %1047 = vmatpush1.msra.mxu0 0.0
    %1048 = vmatprep.subr.mxu0 0.0
    %1049 = vmatpush1.msra.mxu0 0.0
    %1050 = vmatprep.subr.mxu0 0.0
    %1051 = vmatpush1.msra.mxu0 0.0
    %1052 = vmatprep.subr.mxu0 0.0
    %1053 = vmatpush1.msra.mxu0 0.0
    %1054 = vmatprep.subr.mxu0 0.0
    %1055 = vmatpush1.msra.mxu0 0.0
    %1056 = vmatprep.subr.mxu0 0.0
    %1057 = vmatpush1.msra.mxu0 0.0
    %1058 = vmatprep.subr.mxu0 0.0
    %1059 = vmatpush1.msra.mxu0 0.0
    %1060 = vmatprep.subr.mxu0 0.0
    %1061 = vmatpush1.msra.mxu0 0.0
    %1062 = vmatprep.subr.mxu0 0.0
    %1063 = vmatpush1.msra.mxu0 0.0
    %1064 = vmatprep.subr.mxu0 0.0
    %1065 = vmatpush1.msra.mxu0 0.0
    %1066 = vmatprep.subr.mxu0 0.0
    %1067 = vmatpush1.msra.mxu0 0.0
    %1068 = vmatprep.subr.mxu0 0.0
    %1069 = vmatpush1.msra.mxu0 0.0
    %1070 = vmatprep.subr.mxu0 0.0
    %1071 = vmatpush1.msra.mxu0 0.0
    %1072 = vmatprep.subr.mxu0 0.0
    %1073 = vmatpush1.msra.mxu0 0.0
    %1074 = vmatprep.subr.mxu0 0.0
    %1075 = vmatpush1.msra.mxu0 0.0
    %1076 = vmatprep.subr.mxu0 0.0
    %1077 = vmatpush1.msra.mxu0 0.0
    %1078 = vmatprep.subr.mxu0 0.0
    %1079 = vmatpush1.msra.mxu0 0.0
    %1080 = vmatprep.subr.mxu0 0.0
    %1081 = vmatpush1.msra.mxu0 0.0
    %1082 = vmatprep.subr.mxu0 0.0
    %1083 = vmatpush1.msra.mxu0 0.0
    %1084 = vmatprep.subr.mxu0 0.0
    %1085 = vmatpush1.msra.mxu0 0.0
    %1086 = vmatprep.subr.mxu0 0.0
    %1087 = vmatpush1.msra.mxu0 0.0
    %1088 = vmatprep.subr.mxu0 0.0
    %1089 = vmatpush1.msra.mxu0 0.0
    %1090 = vmatprep.subr.mxu0 0.0
    %1091 = vmatpush1.msra.mxu0 0.0
    %1092 = vmatprep.subr.mxu0 0.0
    %1093 = vmatpush1.msra.mxu0 0.0
    %1094 = vmatprep.subr.mxu0 0.0
    %1095 = vmatpush1.msra.mxu0 0.0
    %1096 = vmatprep.subr.mxu0 0.0
    %1097 = vmatpush1.msra.mxu0 0.0
    %1098 = vmatprep.subr.mxu0 0.0
    %1099 = vmatpush1.msra.mxu0 0.0
    %1100 = vmatprep.subr.mxu0 0.0
    %1101 = vmatpush1.msra.mxu0 0.0
    %1102 = vmatprep.subr.mxu0 0.0
    %1103 = vmatpush1.msra.mxu0 0.0
    %1104 = vmatprep.subr.mxu0 0.0
    %1105 = vmatpush1.msra.mxu0 0.0
    %1106 = vmatprep.subr.mxu0 0.0
    %1107 = vmatpush1.msra.mxu0 0.0
    %1108 = vmatprep.mubr.f32.mxu0 0.0
    %1109 = vmatmul.mubr.f32.gmra.mrb[0].mxu0 %v1042
    %v1110 = vpop.f32.mrb[0].mxu0
    %v1111 = vadd.f32 0.0, %v1110
    %v1112 = vpop.f32.mrb[0].mxu0
    %1113 = vdwg.mxu0
    %1114 = vrot.lane.b32.xlu0 %v222, 64
    %v1115 = vpop.permute.xlu0 %1114
    %v1118 = vsel %vm235, %v956, 0
    %1120 = vmatprep.subr.mxu0 0.0
    %1121 = vmatpush1.msra.mxu0 %v1115
    %1122 = vmatprep.subr.mxu0 0.0
    %1123 = vmatpush1.msra.mxu0 0.0
    %1124 = vmatprep.subr.mxu0 0.0
    %1125 = vmatpush1.msra.mxu0 0.0
    %1126 = vmatprep.subr.mxu0 0.0
    %1127 = vmatpush1.msra.mxu0 0.0
    %1128 = vmatprep.subr.mxu0 0.0
    %1129 = vmatpush1.msra.mxu0 0.0
    %1130 = vmatprep.subr.mxu0 0.0
    %1131 = vmatpush1.msra.mxu0 0.0
    %1132 = vmatprep.subr.mxu0 0.0
    %1133 = vmatpush1.msra.mxu0 0.0
    %1134 = vmatprep.subr.mxu0 0.0
    %1135 = vmatpush1.msra.mxu0 0.0
    %1136 = vmatprep.subr.mxu0 0.0
    %1137 = vmatpush1.msra.mxu0 0.0
    %1138 = vmatprep.subr.mxu0 0.0
    %1139 = vmatpush1.msra.mxu0 0.0
    %1140 = vmatprep.subr.mxu0 0.0
    %1141 = vmatpush1.msra.mxu0 0.0
    %1142 = vmatprep.subr.mxu0 0.0
    %1143 = vmatpush1.msra.mxu0 0.0
    %1144 = vmatprep.subr.mxu0 0.0
    %1145 = vmatpush1.msra.mxu0 0.0
    %1146 = vmatprep.subr.mxu0 0.0
    %1147 = vmatpush1.msra.mxu0 0.0
    %1148 = vmatprep.subr.mxu0 0.0
    %1149 = vmatpush1.msra.mxu0 0.0
    %1150 = vmatprep.subr.mxu0 0.0
    %1151 = vmatpush1.msra.mxu0 0.0
    %1152 = vmatprep.subr.mxu0 0.0
    %1153 = vmatpush1.msra.mxu0 0.0
    %1154 = vmatprep.subr.mxu0 0.0
    %1155 = vmatpush1.msra.mxu0 0.0
    %1156 = vmatprep.subr.mxu0 0.0
    %1157 = vmatpush1.msra.mxu0 0.0
    %1158 = vmatprep.subr.mxu0 0.0
    %1159 = vmatpush1.msra.mxu0 0.0
    %1160 = vmatprep.subr.mxu0 0.0
    %1161 = vmatpush1.msra.mxu0 0.0
    %1162 = vmatprep.subr.mxu0 0.0
    %1163 = vmatpush1.msra.mxu0 0.0
    %1164 = vmatprep.subr.mxu0 0.0
    %1165 = vmatpush1.msra.mxu0 0.0
    %1166 = vmatprep.subr.mxu0 0.0
    %1167 = vmatpush1.msra.mxu0 0.0
    %1168 = vmatprep.subr.mxu0 0.0
    %1169 = vmatpush1.msra.mxu0 0.0
    %1170 = vmatprep.subr.mxu0 0.0
    %1171 = vmatpush1.msra.mxu0 0.0
    %1172 = vmatprep.subr.mxu0 0.0
    %1173 = vmatpush1.msra.mxu0 0.0
    %1174 = vmatprep.subr.mxu0 0.0
    %1175 = vmatpush1.msra.mxu0 0.0
    %1176 = vmatprep.subr.mxu0 0.0
    %1177 = vmatpush1.msra.mxu0 0.0
    %1178 = vmatprep.subr.mxu0 0.0
    %1179 = vmatpush1.msra.mxu0 0.0
    %1180 = vmatprep.subr.mxu0 0.0
    %1181 = vmatpush1.msra.mxu0 0.0
    %1182 = vmatprep.subr.mxu0 0.0
    %1183 = vmatpush1.msra.mxu0 0.0
    %1184 = vmatprep.mubr.f32.mxu0 0.0
    %1185 = vmatmul.mubr.f32.gmra.mrb[0].mxu0 %v1118
    %v1186 = vpop.f32.mrb[0].mxu0
    %v1187 = vadd.f32 0.0, %v1186
    %v1188 = vpop.f32.mrb[0].mxu0
    %1189 = vdwg.mxu0
    %1190 = vrot.lane.b32.xlu0 %v224, 64
    %v1191 = vpop.permute.xlu0 %1190
    %v1194 = vsel %vm235, %v957, 0
    %1196 = vmatprep.subr.mxu0 0.0
    %1197 = vmatpush1.msra.mxu0 %v1191
    %1198 = vmatprep.subr.mxu0 0.0
    %1199 = vmatpush1.msra.mxu0 0.0
    %1200 = vmatprep.subr.mxu0 0.0
    %1201 = vmatpush1.msra.mxu0 0.0
    %1202 = vmatprep.subr.mxu0 0.0
    %1203 = vmatpush1.msra.mxu0 0.0
    %1204 = vmatprep.subr.mxu0 0.0
    %1205 = vmatpush1.msra.mxu0 0.0
    %1206 = vmatprep.subr.mxu0 0.0
    %1207 = vmatpush1.msra.mxu0 0.0
    %1208 = vmatprep.subr.mxu0 0.0
    %1209 = vmatpush1.msra.mxu0 0.0
    %1210 = vmatprep.subr.mxu0 0.0
    %1211 = vmatpush1.msra.mxu0 0.0
    %1212 = vmatprep.subr.mxu0 0.0
    %1213 = vmatpush1.msra.mxu0 0.0
    %1214 = vmatprep.subr.mxu0 0.0
    %1215 = vmatpush1.msra.mxu0 0.0
    %1216 = vmatprep.subr.mxu0 0.0
    %1217 = vmatpush1.msra.mxu0 0.0
    %1218 = vmatprep.subr.mxu0 0.0
    %1219 = vmatpush1.msra.mxu0 0.0
    %1220 = vmatprep.subr.mxu0 0.0
    %1221 = vmatpush1.msra.mxu0 0.0
    %1222 = vmatprep.subr.mxu0 0.0
    %1223 = vmatpush1.msra.mxu0 0.0
    %1224 = vmatprep.subr.mxu0 0.0
    %1225 = vmatpush1.msra.mxu0 0.0
    %1226 = vmatprep.subr.mxu0 0.0
    %1227 = vmatpush1.msra.mxu0 0.0
    %1228 = vmatprep.subr.mxu0 0.0
    %1229 = vmatpush1.msra.mxu0 0.0
    %1230 = vmatprep.subr.mxu0 0.0
    %1231 = vmatpush1.msra.mxu0 0.0
    %1232 = vmatprep.subr.mxu0 0.0
    %1233 = vmatpush1.msra.mxu0 0.0
    %1234 = vmatprep.subr.mxu0 0.0
    %1235 = vmatpush1.msra.mxu0 0.0
    %1236 = vmatprep.subr.mxu0 0.0
    %1237 = vmatpush1.msra.mxu0 0.0
    %1238 = vmatprep.subr.mxu0 0.0
    %1239 = vmatpush1.msra.mxu0 0.0
    %1240 = vmatprep.subr.mxu0 0.0
    %1241 = vmatpush1.msra.mxu0 0.0
    %1242 = vmatprep.subr.mxu0 0.0
    %1243 = vmatpush1.msra.mxu0 0.0
    %1244 = vmatprep.subr.mxu0 0.0
    %1245 = vmatpush1.msra.mxu0 0.0
    %1246 = vmatprep.subr.mxu0 0.0
    %1247 = vmatpush1.msra.mxu0 0.0
    %1248 = vmatprep.subr.mxu0 0.0
    %1249 = vmatpush1.msra.mxu0 0.0
    %1250 = vmatprep.subr.mxu0 0.0
    %1251 = vmatpush1.msra.mxu0 0.0
    %1252 = vmatprep.subr.mxu0 0.0
    %1253 = vmatpush1.msra.mxu0 0.0
    %1254 = vmatprep.subr.mxu0 0.0
    %1255 = vmatpush1.msra.mxu0 0.0
    %1256 = vmatprep.subr.mxu0 0.0
    %1257 = vmatpush1.msra.mxu0 0.0
    %1258 = vmatprep.subr.mxu0 0.0
    %1259 = vmatpush1.msra.mxu0 0.0
    %1260 = vmatprep.mubr.f32.mxu0 0.0
    %1261 = vmatmul.mubr.f32.gmra.mrb[0].mxu0 %v1194
    %v1262 = vpop.f32.mrb[0].mxu0
    %v1263 = vadd.f32 0.0, %v1262
    %v1264 = vpop.f32.mrb[0].mxu0
    %1265 = vdwg.mxu0
    %1266 = vrot.lane.b32.xlu0 %v226, 64
    %v1267 = vpop.permute.xlu0 %1266
    %v1270 = vsel %vm235, %v958, 0
    %1272 = vmatprep.subr.mxu0 0.0
    %1273 = vmatpush1.msra.mxu0 %v1267
    %1274 = vmatprep.subr.mxu0 0.0
    %1275 = vmatpush1.msra.mxu0 0.0
    %1276 = vmatprep.subr.mxu0 0.0
    %1277 = vmatpush1.msra.mxu0 0.0
    %1278 = vmatprep.subr.mxu0 0.0
    %1279 = vmatpush1.msra.mxu0 0.0
    %1280 = vmatprep.subr.mxu0 0.0
    %1281 = vmatpush1.msra.mxu0 0.0
    %1282 = vmatprep.subr.mxu0 0.0
    %1283 = vmatpush1.msra.mxu0 0.0
    %1284 = vmatprep.subr.mxu0 0.0
    %1285 = vmatpush1.msra.mxu0 0.0
    %1286 = vmatprep.subr.mxu0 0.0
    %1287 = vmatpush1.msra.mxu0 0.0
    %1288 = vmatprep.subr.mxu0 0.0
    %1289 = vmatpush1.msra.mxu0 0.0
    %1290 = vmatprep.subr.mxu0 0.0
    %1291 = vmatpush1.msra.mxu0 0.0
    %1292 = vmatprep.subr.mxu0 0.0
    %1293 = vmatpush1.msra.mxu0 0.0
    %1294 = vmatprep.subr.mxu0 0.0
    %1295 = vmatpush1.msra.mxu0 0.0
    %1296 = vmatprep.subr.mxu0 0.0
    %1297 = vmatpush1.msra.mxu0 0.0
    %1298 = vmatprep.subr.mxu0 0.0
    %1299 = vmatpush1.msra.mxu0 0.0
    %1300 = vmatprep.subr.mxu0 0.0
    %1301 = vmatpush1.msra.mxu0 0.0
    %1302 = vmatprep.subr.mxu0 0.0
    %1303 = vmatpush1.msra.mxu0 0.0
    %1304 = vmatprep.subr.mxu0 0.0
    %1305 = vmatpush1.msra.mxu0 0.0
    %1306 = vmatprep.subr.mxu0 0.0
    %1307 = vmatpush1.msra.mxu0 0.0
    %1308 = vmatprep.subr.mxu0 0.0
    %1309 = vmatpush1.msra.mxu0 0.0
    %1310 = vmatprep.subr.mxu0 0.0
    %1311 = vmatpush1.msra.mxu0 0.0
    %1312 = vmatprep.subr.mxu0 0.0
    %1313 = vmatpush1.msra.mxu0 0.0
    %1314 = vmatprep.subr.mxu0 0.0
    %1315 = vmatpush1.msra.mxu0 0.0
    %1316 = vmatprep.subr.mxu0 0.0
    %1317 = vmatpush1.msra.mxu0 0.0
    %1318 = vmatprep.subr.mxu0 0.0
    %1319 = vmatpush1.msra.mxu0 0.0
    %1320 = vmatprep.subr.mxu0 0.0
    %1321 = vmatpush1.msra.mxu0 0.0
    %1322 = vmatprep.subr.mxu0 0.0
    %1323 = vmatpush1.msra.mxu0 0.0
    %1324 = vmatprep.subr.mxu0 0.0
    %1325 = vmatpush1.msra.mxu0 0.0
    %1326 = vmatprep.subr.mxu0 0.0
    %1327 = vmatpush1.msra.mxu0 0.0
    %1328 = vmatprep.subr.mxu0 0.0
    %1329 = vmatpush1.msra.mxu0 0.0
    %1330 = vmatprep.subr.mxu0 0.0
    %1331 = vmatpush1.msra.mxu0 0.0
    %1332 = vmatprep.subr.mxu0 0.0
    %1333 = vmatpush1.msra.mxu0 0.0
    %1334 = vmatprep.subr.mxu0 0.0
    %1335 = vmatpush1.msra.mxu0 0.0
    %1336 = vmatprep.mubr.f32.mxu0 0.0
    %1337 = vmatmul.mubr.f32.gmra.mrb[0].mxu0 %v1270
    %v1338 = vpop.f32.mrb[0].mxu0
    %v1339 = vadd.f32 0.0, %v1338
    %v1340 = vpop.f32.mrb[0].mxu0
    %1341 = vdwg.mxu0
    %1342 = vrot.lane.b32.xlu0 %v228, 64
    %v1343 = vpop.permute.xlu0 %1342
    %v1346 = vsel %vm235, %v959, 0
    %1348 = vmatprep.subr.mxu0 0.0
    %1349 = vmatpush1.msra.mxu0 %v1343
    %1350 = vmatprep.subr.mxu0 0.0
    %1351 = vmatpush1.msra.mxu0 0.0
    %1352 = vmatprep.subr.mxu0 0.0
    %1353 = vmatpush1.msra.mxu0 0.0
    %1354 = vmatprep.subr.mxu0 0.0
    %1355 = vmatpush1.msra.mxu0 0.0
    %1356 = vmatprep.subr.mxu0 0.0
    %1357 = vmatpush1.msra.mxu0 0.0
    %1358 = vmatprep.subr.mxu0 0.0
    %1359 = vmatpush1.msra.mxu0 0.0
    %1360 = vmatprep.subr.mxu0 0.0
    %1361 = vmatpush1.msra.mxu0 0.0
    %1362 = vmatprep.subr.mxu0 0.0
    %1363 = vmatpush1.msra.mxu0 0.0
    %1364 = vmatprep.subr.mxu0 0.0
    %1365 = vmatpush1.msra.mxu0 0.0
    %1366 = vmatprep.subr.mxu0 0.0
    %1367 = vmatpush1.msra.mxu0 0.0
    %1368 = vmatprep.subr.mxu0 0.0
    %1369 = vmatpush1.msra.mxu0 0.0
    %1370 = vmatprep.subr.mxu0 0.0
    %1371 = vmatpush1.msra.mxu0 0.0
    %1372 = vmatprep.subr.mxu0 0.0
    %1373 = vmatpush1.msra.mxu0 0.0
    %1374 = vmatprep.subr.mxu0 0.0
    %1375 = vmatpush1.msra.mxu0 0.0
    %1376 = vmatprep.subr.mxu0 0.0
    %1377 = vmatpush1.msra.mxu0 0.0
    %1378 = vmatprep.subr.mxu0 0.0
    %1379 = vmatpush1.msra.mxu0 0.0
    %1380 = vmatprep.subr.mxu0 0.0
    %1381 = vmatpush1.msra.mxu0 0.0
    %1382 = vmatprep.subr.mxu0 0.0
    %1383 = vmatpush1.msra.mxu0 0.0
    %1384 = vmatprep.subr.mxu0 0.0
    %1385 = vmatpush1.msra.mxu0 0.0
    %1386 = vmatprep.subr.mxu0 0.0
    %1387 = vmatpush1.msra.mxu0 0.0
    %1388 = vmatprep.subr.mxu0 0.0
    %1389 = vmatpush1.msra.mxu0 0.0
    %1390 = vmatprep.subr.mxu0 0.0
    %1391 = vmatpush1.msra.mxu0 0.0
    %1392 = vmatprep.subr.mxu0 0.0
    %1393 = vmatpush1.msra.mxu0 0.0
    %1394 = vmatprep.subr.mxu0 0.0
    %1395 = vmatpush1.msra.mxu0 0.0
    %1396 = vmatprep.subr.mxu0 0.0
    %1397 = vmatpush1.msra.mxu0 0.0
    %1398 = vmatprep.subr.mxu0 0.0
    %1399 = vmatpush1.msra.mxu0 0.0
    %1400 = vmatprep.subr.mxu0 0.0
    %1401 = vmatpush1.msra.mxu0 0.0
    %1402 = vmatprep.subr.mxu0 0.0
    %1403 = vmatpush1.msra.mxu0 0.0
    %1404 = vmatprep.subr.mxu0 0.0
    %1405 = vmatpush1.msra.mxu0 0.0
    %1406 = vmatprep.subr.mxu0 0.0
    %1407 = vmatpush1.msra.mxu0 0.0
    %1408 = vmatprep.subr.mxu0 0.0
    %1409 = vmatpush1.msra.mxu0 0.0
    %1410 = vmatprep.subr.mxu0 0.0
    %1411 = vmatpush1.msra.mxu0 0.0
    %1412 = vmatprep.mubr.f32.mxu0 0.0
    %1413 = vmatmul.mubr.f32.gmra.mrb[0].mxu0 %v1346
    %v1414 = vpop.f32.mrb[0].mxu0
    %v1415 = vadd.f32 0.0, %v1414
    %v1416 = vpop.f32.mrb[0].mxu0
    %1417 = vdwg.mxu0
    %1418 = vrot.lane.b32.xlu0 %v230, 64
    %v1419 = vpop.permute.xlu0 %1418
    %v1422 = vsel %vm235, %v960, 0
    %1424 = vmatprep.subr.mxu0 0.0
    %1425 = vmatpush1.msra.mxu0 %v1419
    %1426 = vmatprep.subr.mxu0 0.0
    %1427 = vmatpush1.msra.mxu0 0.0
    %1428 = vmatprep.subr.mxu0 0.0
    %1429 = vmatpush1.msra.mxu0 0.0
    %1430 = vmatprep.subr.mxu0 0.0
    %1431 = vmatpush1.msra.mxu0 0.0
    %1432 = vmatprep.subr.mxu0 0.0
    %1433 = vmatpush1.msra.mxu0 0.0
    %1434 = vmatprep.subr.mxu0 0.0
    %1435 = vmatpush1.msra.mxu0 0.0
    %1436 = vmatprep.subr.mxu0 0.0
    %1437 = vmatpush1.msra.mxu0 0.0
    %1438 = vmatprep.subr.mxu0 0.0
    %1439 = vmatpush1.msra.mxu0 0.0
    %1440 = vmatprep.subr.mxu0 0.0
    %1441 = vmatpush1.msra.mxu0 0.0
    %1442 = vmatprep.subr.mxu0 0.0
    %1443 = vmatpush1.msra.mxu0 0.0
    %1444 = vmatprep.subr.mxu0 0.0
    %1445 = vmatpush1.msra.mxu0 0.0
    %1446 = vmatprep.subr.mxu0 0.0
    %1447 = vmatpush1.msra.mxu0 0.0
    %1448 = vmatprep.subr.mxu0 0.0
    %1449 = vmatpush1.msra.mxu0 0.0
    %1450 = vmatprep.subr.mxu0 0.0
    %1451 = vmatpush1.msra.mxu0 0.0
    %1452 = vmatprep.subr.mxu0 0.0
    %1453 = vmatpush1.msra.mxu0 0.0
    %1454 = vmatprep.subr.mxu0 0.0
    %1455 = vmatpush1.msra.mxu0 0.0
    %1456 = vmatprep.subr.mxu0 0.0
    %1457 = vmatpush1.msra.mxu0 0.0
    %1458 = vmatprep.subr.mxu0 0.0
    %1459 = vmatpush1.msra.mxu0 0.0
    %1460 = vmatprep.subr.mxu0 0.0
    %1461 = vmatpush1.msra.mxu0 0.0
    %1462 = vmatprep.subr.mxu0 0.0
    %1463 = vmatpush1.msra.mxu0 0.0
    %1464 = vmatprep.subr.mxu0 0.0
    %1465 = vmatpush1.msra.mxu0 0.0
    %1466 = vmatprep.subr.mxu0 0.0
    %1467 = vmatpush1.msra.mxu0 0.0
    %1468 = vmatprep.subr.mxu0 0.0
    %1469 = vmatpush1.msra.mxu0 0.0
    %1470 = vmatprep.subr.mxu0 0.0
    %1471 = vmatpush1.msra.mxu0 0.0
    %1472 = vmatprep.subr.mxu0 0.0
    %1473 = vmatpush1.msra.mxu0 0.0
    %1474 = vmatprep.subr.mxu0 0.0
    %1475 = vmatpush1.msra.mxu0 0.0
    %1476 = vmatprep.subr.mxu0 0.0
    %1477 = vmatpush1.msra.mxu0 0.0
    %1478 = vmatprep.subr.mxu0 0.0
    %1479 = vmatpush1.msra.mxu0 0.0
    %1480 = vmatprep.subr.mxu0 0.0
    %1481 = vmatpush1.msra.mxu0 0.0
    %1482 = vmatprep.subr.mxu0 0.0
    %1483 = vmatpush1.msra.mxu0 0.0
    %1484 = vmatprep.subr.mxu0 0.0
    %1485 = vmatpush1.msra.mxu0 0.0
    %1486 = vmatprep.subr.mxu0 0.0
    %1487 = vmatpush1.msra.mxu0 0.0
    %1488 = vmatprep.mubr.f32.mxu0 0.0
    %1489 = vmatmul.mubr.f32.gmra.mrb[0].mxu0 %v1422
    %v1490 = vpop.f32.mrb[0].mxu0
    %v1491 = vadd.f32 0.0, %v1490
    %v1492 = vpop.f32.mrb[0].mxu0
    %1493 = vdwg.mxu0
    %1494 = vrot.lane.b32.xlu0 %v232, 64
    %v1495 = vpop.permute.xlu0 %1494
    %v1498 = vsel %vm235, %v961, 0
    %1500 = vmatprep.subr.mxu0 0.0
    %1501 = vmatpush1.msra.mxu0 %v1495
    %1502 = vmatprep.subr.mxu0 0.0
    %1503 = vmatpush1.msra.mxu0 0.0
    %1504 = vmatprep.subr.mxu0 0.0
    %1505 = vmatpush1.msra.mxu0 0.0
    %1506 = vmatprep.subr.mxu0 0.0
    %1507 = vmatpush1.msra.mxu0 0.0
    %1508 = vmatprep.subr.mxu0 0.0
    %1509 = vmatpush1.msra.mxu0 0.0
    %1510 = vmatprep.subr.mxu0 0.0
    %1511 = vmatpush1.msra.mxu0 0.0
    %1512 = vmatprep.subr.mxu0 0.0
    %1513 = vmatpush1.msra.mxu0 0.0
    %1514 = vmatprep.subr.mxu0 0.0
    %1515 = vmatpush1.msra.mxu0 0.0
    %1516 = vmatprep.subr.mxu0 0.0
    %1517 = vmatpush1.msra.mxu0 0.0
    %1518 = vmatprep.subr.mxu0 0.0
    %1519 = vmatpush1.msra.mxu0 0.0
    %1520 = vmatprep.subr.mxu0 0.0
    %1521 = vmatpush1.msra.mxu0 0.0
    %1522 = vmatprep.subr.mxu0 0.0
    %1523 = vmatpush1.msra.mxu0 0.0
    %1524 = vmatprep.subr.mxu0 0.0
    %1525 = vmatpush1.msra.mxu0 0.0
    %1526 = vmatprep.subr.mxu0 0.0
    %1527 = vmatpush1.msra.mxu0 0.0
    %1528 = vmatprep.subr.mxu0 0.0
    %1529 = vmatpush1.msra.mxu0 0.0
    %1530 = vmatprep.subr.mxu0 0.0
    %1531 = vmatpush1.msra.mxu0 0.0
    %1532 = vmatprep.subr.mxu0 0.0
    %1533 = vmatpush1.msra.mxu0 0.0
    %1534 = vmatprep.subr.mxu0 0.0
    %1535 = vmatpush1.msra.mxu0 0.0
    %1536 = vmatprep.subr.mxu0 0.0
    %1537 = vmatpush1.msra.mxu0 0.0
    %1538 = vmatprep.subr.mxu0 0.0
    %1539 = vmatpush1.msra.mxu0 0.0
    %1540 = vmatprep.subr.mxu0 0.0
    %1541 = vmatpush1.msra.mxu0 0.0
    %1542 = vmatprep.subr.mxu0 0.0
    %1543 = vmatpush1.msra.mxu0 0.0
    %1544 = vmatprep.subr.mxu0 0.0
    %1545 = vmatpush1.msra.mxu0 0.0
    %1546 = vmatprep.subr.mxu0 0.0
    %1547 = vmatpush1.msra.mxu0 0.0
    %1548 = vmatprep.subr.mxu0 0.0
    %1549 = vmatpush1.msra.mxu0 0.0
    %1550 = vmatprep.subr.mxu0 0.0
    %1551 = vmatpush1.msra.mxu0 0.0
    %1552 = vmatprep.subr.mxu0 0.0
    %1553 = vmatpush1.msra.mxu0 0.0
    %1554 = vmatprep.subr.mxu0 0.0
    %1555 = vmatpush1.msra.mxu0 0.0
    %1556 = vmatprep.subr.mxu0 0.0
    %1557 = vmatpush1.msra.mxu0 0.0
    %1558 = vmatprep.subr.mxu0 0.0
    %1559 = vmatpush1.msra.mxu0 0.0
    %1560 = vmatprep.subr.mxu0 0.0
    %1561 = vmatpush1.msra.mxu0 0.0
    %1562 = vmatprep.subr.mxu0 0.0
    %1563 = vmatpush1.msra.mxu0 0.0
    %1564 = vmatprep.mubr.f32.mxu0 0.0
    %1565 = vmatmul.mubr.f32.gmra.mrb[0].mxu0 %v1498
    %v1566 = vpop.f32.mrb[0].mxu0
    %v1567 = vadd.f32 0.0, %v1566
    %v1568 = vpop.f32.mrb[0].mxu0
    %1569 = vdwg.mxu0
    %1572 = vrot.lane.b32.xlu0 %v1187, 8
    %v1573 = vpop.permute.xlu0 %1572
    %1574 = vrot.lane.b32.xlu0 %v1263, 8
    %v1575 = vpop.permute.xlu0 %1574
    %1580 = vrot.lane.b32.xlu0 %v1339, 16
    %v1581 = vpop.permute.xlu0 %1580
    %1582 = vrot.lane.b32.xlu0 %v1415, 16
    %v1583 = vpop.permute.xlu0 %1582
    %1588 = vrot.lane.b32.xlu0 %v1491, 24
    %v1589 = vpop.permute.xlu0 %1588
    %1590 = vrot.lane.b32.xlu0 %v1567, 24
    %v1591 = vpop.permute.xlu0 %1590
    %v1594 = vsel %vm235, %v1035, %v1573
    %v1595 = vsel %vm235, %v1111, %v1575
    %vm1596 = vcmask 130048
    %v1597 = vsel %vm1596, %v1594, %v1581
    %v1598 = vsel %vm1596, %v1595, %v1583
    %vm1599 = vcmask 195584
    %v1600 = vsel %vm1599, %v1597, %v1589
    %v1601 = vsel %vm1599, %v1598, %v1591
    %v1602 = vld [vmem:[%s6] sm:$0xff]
    %v1603 = vld [vmem:[%s6 + $0x8] sm:$0xff]
    %v1604 = vld [vmem:[%s6 + $0x10] sm:$0xff]
    %v1605 = vld [vmem:[%s6 + $0x18] sm:$0xff]
    %v1606 = vld [vmem:[%s7] sm:$0x1]
    %v1608 = vlaneseq
    %v1609 = vshrl.u32 %v1608, 7
    %v1610 = vsub.s32 0, %v1609
    %v1611 = vrot.slane %v1606, %v1610
    %v1614 = vsel %vm68, %v1600, 0
    %v1617 = vsel %vm68, %v1601, 0
    %1619 = vmatprep.subr.mxu0 0.0
    %1620 = vmatpush1.msra.mxu0 %v1602
    %1621 = vmatprep.subr.mxu0 0.0
    %1622 = vmatpush1.msra.mxu0 %v1603
    %1623 = vmatprep.subr.mxu0 0.0
    %1624 = vmatpush1.msra.mxu0 %v1604
    %1625 = vmatprep.subr.mxu0 0.0
    %1626 = vmatpush1.msra.mxu0 %v1605
    %1627 = vmatprep.subr.mxu0 0.0
    %1628 = vmatpush1.msra.mxu0 0.0
    %1629 = vmatprep.subr.mxu0 0.0
    %1630 = vmatpush1.msra.mxu0 0.0
    %1631 = vmatprep.subr.mxu0 0.0
    %1632 = vmatpush1.msra.mxu0 0.0
    %1633 = vmatprep.subr.mxu0 0.0
    %1634 = vmatpush1.msra.mxu0 0.0
    %1635 = vmatprep.subr.mxu0 0.0
    %1636 = vmatpush1.msra.mxu0 0.0
    %1637 = vmatprep.subr.mxu0 0.0
    %1638 = vmatpush1.msra.mxu0 0.0
    %1639 = vmatprep.subr.mxu0 0.0
    %1640 = vmatpush1.msra.mxu0 0.0
    %1641 = vmatprep.subr.mxu0 0.0
    %1642 = vmatpush1.msra.mxu0 0.0
    %1643 = vmatprep.subr.mxu0 0.0
    %1644 = vmatpush1.msra.mxu0 0.0
    %1645 = vmatprep.subr.mxu0 0.0
    %1646 = vmatpush1.msra.mxu0 0.0
    %1647 = vmatprep.subr.mxu0 0.0
    %1648 = vmatpush1.msra.mxu0 0.0
    %1649 = vmatprep.subr.mxu0 0.0
    %1650 = vmatpush1.msra.mxu0 0.0
    %1651 = vmatprep.subr.mxu0 0.0
    %1652 = vmatpush1.msra.mxu0 0.0
    %1653 = vmatprep.subr.mxu0 0.0
    %1654 = vmatpush1.msra.mxu0 0.0
    %1655 = vmatprep.subr.mxu0 0.0
    %1656 = vmatpush1.msra.mxu0 0.0
    %1657 = vmatprep.subr.mxu0 0.0
    %1658 = vmatpush1.msra.mxu0 0.0
    %1659 = vmatprep.subr.mxu0 0.0
    %1660 = vmatpush1.msra.mxu0 0.0
    %1661 = vmatprep.subr.mxu0 0.0
    %1662 = vmatpush1.msra.mxu0 0.0
    %1663 = vmatprep.subr.mxu0 0.0
    %1664 = vmatpush1.msra.mxu0 0.0
    %1665 = vmatprep.subr.mxu0 0.0
    %1666 = vmatpush1.msra.mxu0 0.0
    %1667 = vmatprep.subr.mxu0 0.0
    %1668 = vmatpush1.msra.mxu0 0.0
    %1669 = vmatprep.subr.mxu0 0.0
    %1670 = vmatpush1.msra.mxu0 0.0
    %1671 = vmatprep.subr.mxu0 0.0
    %1672 = vmatpush1.msra.mxu0 0.0
    %1673 = vmatprep.subr.mxu0 0.0
    %1674 = vmatpush1.msra.mxu0 0.0
    %1675 = vmatprep.subr.mxu0 0.0
    %1676 = vmatpush1.msra.mxu0 0.0
    %1677 = vmatprep.subr.mxu0 0.0
    %1678 = vmatpush1.msra.mxu0 0.0
    %1679 = vmatprep.subr.mxu0 0.0
    %1680 = vmatpush1.msra.mxu0 0.0
    %1681 = vmatprep.subr.mxu0 0.0
    %1682 = vmatpush1.msra.mxu0 0.0
    %1683 = vmatprep.mubr.f32.mxu0 0.0
    %1684 = vmatmul.mubr.f32.gmra.mrb[0].mxu0 %v1614
    %v1685 = vpop.f32.mrb[0].mxu0
    %v1686 = vadd.f32 %v1611, %v1685
    %v1687 = vpop.f32.mrb[0].mxu0
    %1688 = vmatprep.mubr.f32.mxu0 0.0
    %1689 = vmatmul.mubr.f32.gmra.mrb[0].mxu0 %v1617
    %v1690 = vpop.f32.mrb[0].mxu0
    %v1691 = vadd.f32 %v1611, %v1690
    %v1692 = vpop.f32.mrb[0].mxu0
    %1693 = vdwg.mxu0
    %v1694 = vadd.f32 %v62, %v1686
    %v1695 = vadd.f32 %v63, %v1691
    %v1696 = vld [vmem:[%s8] sm:$0x1]
    %v1697 = vld [vmem:[%s9] sm:$0x1]
    %v1698 = vsel %vm68, %v1694, 0.0
    %1699 = vadd.xlane.f32.xlu0 %v1698
    %v1700 = vpop.xlane.xlu0 %1699
    %v1701 = vsel %vm68, %v1695, 0.0
    %1702 = vadd.xlane.f32.xlu0 %v1701
    %v1703 = vpop.xlane.xlu0 %1702
    %v1704 = vmul.f32 %v1700, %v75
    %v1705 = vmul.f32 %v1703, %v75
    %v1706 = vsub.f32 %v1694, %v1704
    %v1707 = vsub.f32 %v1695, %v1705
    %v1708 = vmul.f32 %v1706, %v1706
    %v1709 = vmul.f32 %v1707, %v1707
    %v1710 = vsel %vm68, %v1708, 0.0
    %1711 = vadd.xlane.f32.xlu0 %v1710
    %v1712 = vpop.xlane.xlu0 %1711
    %v1713 = vsel %vm68, %v1709, 0.0
    %1714 = vadd.xlane.f32.xlu0 %v1713
    %v1715 = vpop.xlane.xlu0 %1714
    %v1716 = vmul.f32 %v1712, %v88
    %v1717 = vmul.f32 %v1715, %v88
    %v1718 = vrsqrt.pop %v1716
    %v1719 = vmul.f32 %v1716, %v1718
    %vm1720 = vcmp.eq.f32.partialorder %v1716, inf
    %v1721 = vsel %vm1720, %v1716, %v1719
    %vm1722 = vcmp.eq.f32.partialorder %v1716, 0.0
    %v1723 = vand.u32 %v1716, 2147483648
    %v1724 = vsel %vm1722, %v1723, %v1721
    %v1725 = vrsqrt.pop %v1717
    %v1726 = vmul.f32 %v1717, %v1725
    %vm1727 = vcmp.eq.f32.partialorder %v1717, inf
    %v1728 = vsel %vm1727, %v1717, %v1726
    %vm1729 = vcmp.eq.f32.partialorder %v1717, 0.0
    %v1730 = vand.u32 %v1717, 2147483648
    %v1731 = vsel %vm1729, %v1730, %v1728
    %v1732 = vadd.f32 %v1724, 1e-06
    %v1733 = vadd.f32 %v1731, 1e-06
    %v1734 = vrcp.pop %v1732
    %v1735 = vrcp.pop %v1733
    %v1737 = vlaneseq
    %v1738 = vshrl.u32 %v1737, 7
    %v1739 = vsub.s32 0, %v1738
    %v1740 = vrot.slane %v1696, %v1739
    %v1742 = vmul.f32 %v1740, %v1706
    %v1743 = vmul.f32 %v1740, %v1707
    %v1744 = vmul.f32 %v1742, %v1734
    %v1745 = vmul.f32 %v1743, %v1735
    %v1747 = vlaneseq
    %v1748 = vshrl.u32 %v1747, 7
    %v1749 = vsub.s32 0, %v1748
    %v1750 = vrot.slane %v1697, %v1749
    %v1752 = vadd.f32 %v1744, %v1750
    %v1753 = vadd.f32 %v1745, %v1750
    %v1754 = vld [vmem:[%s10] sm:$0xff]
    %v1755 = vld [vmem:[%s10 + $0x8] sm:$0xff]
    %v1756 = vld [vmem:[%s10 + $0x10] sm:$0xff]
    %v1757 = vld [vmem:[%s10 + $0x18] sm:$0xff]
    %v1758 = vld [vmem:[%s11] sm:$0x1]
    %v1760 = vlaneseq
    %v1761 = vshrl.u32 %v1760, 7
    %v1762 = vsub.s32 0, %v1761
    %v1763 = vrot.slane %v1758, %v1762
    %v1766 = vsel %vm68, %v1752, 0
    %v1769 = vsel %vm68, %v1753, 0
    %1771 = vmatprep.subr.mxu0 0.0
    %1772 = vmatpush1.msra.mxu0 %v1754
    %1773 = vmatprep.subr.mxu0 0.0
    %1774 = vmatpush1.msra.mxu0 %v1755
    %1775 = vmatprep.subr.mxu0 0.0
    %1776 = vmatpush1.msra.mxu0 %v1756
    %1777 = vmatprep.subr.mxu0 0.0
    %1778 = vmatpush1.msra.mxu0 %v1757
    %1779 = vmatprep.subr.mxu0 0.0
    %1780 = vmatpush1.msra.mxu0 0.0
    %1781 = vmatprep.subr.mxu0 0.0
    %1782 = vmatpush1.msra.mxu0 0.0
    %1783 = vmatprep.subr.mxu0 0.0
    %1784 = vmatpush1.msra.mxu0 0.0
    %1785 = vmatprep.subr.mxu0 0.0
    %1786 = vmatpush1.msra.mxu0 0.0
    %1787 = vmatprep.subr.mxu0 0.0
    %1788 = vmatpush1.msra.mxu0 0.0
    %1789 = vmatprep.subr.mxu0 0.0
    %1790 = vmatpush1.msra.mxu0 0.0
    %1791 = vmatprep.subr.mxu0 0.0
    %1792 = vmatpush1.msra.mxu0 0.0
    %1793 = vmatprep.subr.mxu0 0.0
    %1794 = vmatpush1.msra.mxu0 0.0
    %1795 = vmatprep.subr.mxu0 0.0
    %1796 = vmatpush1.msra.mxu0 0.0
    %1797 = vmatprep.subr.mxu0 0.0
    %1798 = vmatpush1.msra.mxu0 0.0
    %1799 = vmatprep.subr.mxu0 0.0
    %1800 = vmatpush1.msra.mxu0 0.0
    %1801 = vmatprep.subr.mxu0 0.0
    %1802 = vmatpush1.msra.mxu0 0.0
    %1803 = vmatprep.subr.mxu0 0.0
    %1804 = vmatpush1.msra.mxu0 0.0
    %1805 = vmatprep.subr.mxu0 0.0
    %1806 = vmatpush1.msra.mxu0 0.0
    %1807 = vmatprep.subr.mxu0 0.0
    %1808 = vmatpush1.msra.mxu0 0.0
    %1809 = vmatprep.subr.mxu0 0.0
    %1810 = vmatpush1.msra.mxu0 0.0
    %1811 = vmatprep.subr.mxu0 0.0
    %1812 = vmatpush1.msra.mxu0 0.0
    %1813 = vmatprep.subr.mxu0 0.0
    %1814 = vmatpush1.msra.mxu0 0.0
    %1815 = vmatprep.subr.mxu0 0.0
    %1816 = vmatpush1.msra.mxu0 0.0
    %1817 = vmatprep.subr.mxu0 0.0
    %1818 = vmatpush1.msra.mxu0 0.0
    %1819 = vmatprep.subr.mxu0 0.0
    %1820 = vmatpush1.msra.mxu0 0.0
    %1821 = vmatprep.subr.mxu0 0.0
    %1822 = vmatpush1.msra.mxu0 0.0
    %1823 = vmatprep.subr.mxu0 0.0
    %1824 = vmatpush1.msra.mxu0 0.0
    %1825 = vmatprep.subr.mxu0 0.0
    %1826 = vmatpush1.msra.mxu0 0.0
    %1827 = vmatprep.subr.mxu0 0.0
    %1828 = vmatpush1.msra.mxu0 0.0
    %1829 = vmatprep.subr.mxu0 0.0
    %1830 = vmatpush1.msra.mxu0 0.0
    %1831 = vmatprep.subr.mxu0 0.0
    %1832 = vmatpush1.msra.mxu0 0.0
    %1833 = vmatprep.subr.mxu0 0.0
    %1834 = vmatpush1.msra.mxu0 0.0
    %1835 = vmatprep.mubr.f32.mxu0 0.0
    %1836 = vmatmul.mubr.f32.gmra.mrb[0].mxu0 %v1766
    %v1837 = vpop.f32.mrb[0].mxu0
    %v1838 = vadd.f32 %v1763, %v1837
    %v1839 = vpop.f32.mrb[0].mxu0
    %1840 = vmatprep.mubr.f32.mxu0 0.0
    %1841 = vmatmul.mubr.f32.gmra.mrb[0].mxu0 %v1769
    %v1842 = vpop.f32.mrb[0].mxu0
    %v1843 = vadd.f32 %v1763, %v1842
    %v1844 = vpop.f32.mrb[0].mxu0
    %1845 = vdwg.mxu0
    %v1846 = vmax.f32 %v1838, 0.0
    %v1847 = vmax.f32 %v1843, 0.0
    %v1848 = vld [vmem:[%s12] sm:$0xff]
    %v1849 = vld [vmem:[%s12 + $0x8] sm:$0xff]
    %v1850 = vld [vmem:[%s12 + $0x10] sm:$0xff]
    %v1851 = vld [vmem:[%s12 + $0x18] sm:$0xff]
    %v1852 = vld [vmem:[%s12 + $0x20] sm:$0xff]
    %v1853 = vld [vmem:[%s12 + $0x28] sm:$0xff]
    %v1854 = vld [vmem:[%s12 + $0x30] sm:$0xff]
    %v1855 = vld [vmem:[%s12 + $0x38] sm:$0xff]
    %v1856 = vld [vmem:[%s13] sm:$0x1]
    %v1858 = vlaneseq
    %v1859 = vshrl.u32 %v1858, 7
    %v1860 = vsub.s32 0, %v1859
    %v1861 = vrot.slane %v1856, %v1860
    %vm1863 = vcmask 523264
    %v1865 = vsel %vm1863, %v1846, 0
    %v1868 = vsel %vm1863, %v1847, 0
    %1870 = vmatprep.subr.mxu0 0.0
    %1871 = vmatpush1.msra.mxu0 %v1848
    %1872 = vmatprep.subr.mxu0 0.0
    %1873 = vmatpush1.msra.mxu0 %v1849
    %1874 = vmatprep.subr.mxu0 0.0
    %1875 = vmatpush1.msra.mxu0 %v1850
    %1876 = vmatprep.subr.mxu0 0.0
    %1877 = vmatpush1.msra.mxu0 %v1851
    %1878 = vmatprep.subr.mxu0 0.0
    %1879 = vmatpush1.msra.mxu0 %v1852
    %1880 = vmatprep.subr.mxu0 0.0
    %1881 = vmatpush1.msra.mxu0 %v1853
    %1882 = vmatprep.subr.mxu0 0.0
    %1883 = vmatpush1.msra.mxu0 %v1854
    %1884 = vmatprep.subr.mxu0 0.0
    %1885 = vmatpush1.msra.mxu0 %v1855
    %1886 = vmatprep.subr.mxu0 0.0
    %1887 = vmatpush1.msra.mxu0 0.0
    %1888 = vmatprep.subr.mxu0 0.0
    %1889 = vmatpush1.msra.mxu0 0.0
    %1890 = vmatprep.subr.mxu0 0.0
    %1891 = vmatpush1.msra.mxu0 0.0
    %1892 = vmatprep.subr.mxu0 0.0
    %1893 = vmatpush1.msra.mxu0 0.0
    %1894 = vmatprep.subr.mxu0 0.0
    %1895 = vmatpush1.msra.mxu0 0.0
    %1896 = vmatprep.subr.mxu0 0.0
    %1897 = vmatpush1.msra.mxu0 0.0
    %1898 = vmatprep.subr.mxu0 0.0
    %1899 = vmatpush1.msra.mxu0 0.0
    %1900 = vmatprep.subr.mxu0 0.0
    %1901 = vmatpush1.msra.mxu0 0.0
    %1902 = vmatprep.subr.mxu0 0.0
    %1903 = vmatpush1.msra.mxu0 0.0
    %1904 = vmatprep.subr.mxu0 0.0
    %1905 = vmatpush1.msra.mxu0 0.0
    %1906 = vmatprep.subr.mxu0 0.0
    %1907 = vmatpush1.msra.mxu0 0.0
    %1908 = vmatprep.subr.mxu0 0.0
    %1909 = vmatpush1.msra.mxu0 0.0
    %1910 = vmatprep.subr.mxu0 0.0
    %1911 = vmatpush1.msra.mxu0 0.0
    %1912 = vmatprep.subr.mxu0 0.0
    %1913 = vmatpush1.msra.mxu0 0.0
    %1914 = vmatprep.subr.mxu0 0.0
    %1915 = vmatpush1.msra.mxu0 0.0
    %1916 = vmatprep.subr.mxu0 0.0
    %1917 = vmatpush1.msra.mxu0 0.0
    %1918 = vmatprep.subr.mxu0 0.0
    %1919 = vmatpush1.msra.mxu0 0.0
    %1920 = vmatprep.subr.mxu0 0.0
    %1921 = vmatpush1.msra.mxu0 0.0
    %1922 = vmatprep.subr.mxu0 0.0
    %1923 = vmatpush1.msra.mxu0 0.0
    %1924 = vmatprep.subr.mxu0 0.0
    %1925 = vmatpush1.msra.mxu0 0.0
    %1926 = vmatprep.subr.mxu0 0.0
    %1927 = vmatpush1.msra.mxu0 0.0
    %1928 = vmatprep.subr.mxu0 0.0
    %1929 = vmatpush1.msra.mxu0 0.0
    %1930 = vmatprep.subr.mxu0 0.0
    %1931 = vmatpush1.msra.mxu0 0.0
    %1932 = vmatprep.subr.mxu0 0.0
    %1933 = vmatpush1.msra.mxu0 0.0
    %1934 = vmatprep.mubr.f32.mxu0 0.0
    %1935 = vmatmul.mubr.f32.gmra.mrb[0].mxu0 %v1865
    %v1936 = vpop.f32.mrb[0].mxu0
    %v1937 = vadd.f32 %v1861, %v1936
    %v1938 = vpop.f32.mrb[0].mxu0
    %1939 = vmatprep.mubr.f32.mxu0 0.0
    %1940 = vmatmul.mubr.f32.gmra.mrb[0].mxu0 %v1868
    %v1941 = vpop.f32.mrb[0].mxu0
    %v1942 = vadd.f32 %v1861, %v1941
    %v1943 = vpop.f32.mrb[0].mxu0
    %1944 = vdwg.mxu0
    %v1945 = vadd.f32 %v1694, %v1937
    %v1946 = vadd.f32 %v1695, %v1942
    %1947 = vst.msk [vmem:[#allocation5] sm:$0xff] %vm68, %v1945
    %1948 = vst.msk [vmem:[#allocation5 + $0x8] sm:$0xff] %vm68, %v1946
    // Predicated region
    $region62: #{tpu_custom_call.1} parent=1 // pred_check
      _
    $region63: #{tpu_custom_call.1} parent=1 // pred_check_branch
      %1950 = sbr.rel (0) target = $region65
    $region64: #{tpu_custom_call.1} parent=1 // pred_region
      %s1952 = ssub.s32 256, 256
      %1953 = vsyncadd [#allocation4], %s1952
      %s1954 = sshll.u32 [#allocation5], 4
      %s1955 = int_to_ptr.vmem [resolvable:$true] %s1954
      %1960 = dma.vmem_to_hbm [thread:$0]  %s1955, 256, %s14, [#allocation4], 128, 128, 8
    $region65: #{tpu_custom_call.1} parent=1 // pred_fallthru
      _
    // Predicated region
    $region66: #{tpu_custom_call.1} parent=1 // pred_check
      _
    $region67: #{tpu_custom_call.1} parent=1 // pred_check_branch
      %1962 = sbr.rel (0) target = $region69
    $region68: #{tpu_custom_call.1} parent=1 // pred_region
      %1963 = dma.done [#allocation4], 256
    $region69: #{tpu_custom_call.1} parent=1 // pred_fallthru
      _
    %1964 = vsyncpa [#allocation3], 1
    %1965 = vsyncpa [#allocation4], 1

</llo_original>
